<compile_context>
chip_gen: v6e
topology: v6e:2x2x1
jax: 0.10.0
libtpu: 0.0.40
codegen_flags: <defaults>
</compile_context>

<pallas_src>
import functools

import jax
import jax.numpy as jnp
from jax import lax
from jax.experimental import pallas as pl
from jax.experimental.pallas import tpu as pltpu


# ----------------------------------------------------------------------------- kernel
def _se_kernel(x_ref, pool_ref, expand_ref, w1t_ref, w2t_ref, o_ref, *,
               inv_h, big_dot_precision):
    # x_ref: (TB, S*H) lane-dense block of the flattened input.
    x2 = x_ref[...]

    # Squeeze: per-(row, s) SUM over h via a 0/1 block-diagonal pooling matmul,
    # then an exact f32 scalar multiply by 1/h (VPU has slack; keeps the mean
    # accurate for bf16 inputs / non-power-of-two h).
    y = jnp.dot(x2, pool_ref[...],
                precision=big_dot_precision,
                preferred_element_type=jnp.float32) * inv_h        # (TB, S)

    # Excitation MLP in f32: S -> S//r (ReLU) -> S (Sigmoid), no bias.
    y = jnp.dot(y, w1t_ref[...],
                precision=big_dot_precision,
                preferred_element_type=jnp.float32)                # (TB, S//r)
    y = jnp.maximum(y, 0.0)
    y = jnp.dot(y, w2t_ref[...],
                precision=big_dot_precision,
                preferred_element_type=jnp.float32)                # (TB, S)
    y = jax.nn.sigmoid(y)

    # Broadcast the per-(b, s) scale over the h lanes of each s-chunk.  Kept at
    # HIGHEST so the 0/1 expansion is an exact lane replication of the f32
    # sigmoid output (K = S here, so the extra MXU passes are negligible).
    # NOTE: this is a full-block (TB, S*H) f32 temp -- it is budgeted in
    # vmem_limit_bytes below.
    scale = jnp.dot(y, expand_ref[...],
                    precision=lax.Precision.HIGHEST,
                    preferred_element_type=jnp.float32)            # (TB, S*H)

    # Final rescale in the input dtype (no whole-block f32 copy of x).
    o_ref[...] = (x2 * scale.astype(x2.dtype)).astype(o_ref.dtype)


# ----------------------------------------------------------------------------- sizing
def _num_tensorcores():
    """Best-effort TensorCore-per-chip count (2 on v7x, 1 on v5e/v6e)."""
    try:
        info = pltpu.get_tpu_info()
        for name in ("num_cores", "core_count", "num_tensorcores",
                     "tensorcores_per_chip", "cores_per_chip"):
            v = getattr(info, name, None)
            if isinstance(v, int) and v > 0:
                return v
    except Exception:
        pass
    try:
        kind = jax.devices()[0].device_kind.lower()
        if "v7" in kind:
            return 2
    except Exception:
        pass
    return 1


def _pick_batch_tile(bs, row_bytes, num_tc, target_bytes=4 << 20):
    """Batch tile TB (multiple of 8) targeting ~4 MiB blocks.

    On multi-TensorCore parts (v7x) TB is capped so there are >=2 grid steps
    per core when bs permits (keeps the BlockSpec pipeline double-buffered on
    each core).  On 1-TC parts a single bigger tile is preferred.  bs is padded
    up to a multiple of TB (never a whole-array fallback block).
    """
    bs8 = ((bs + 7) // 8) * 8
    tb = max(8, (target_bytes // row_bytes) // 8 * 8)
    tb = min(tb, bs8)
    if num_tc > 1 and bs8 >= 16:
        desired_steps = min(2 * num_tc, bs8 // 8)
        cap = max(8, (bs8 // desired_steps) // 8 * 8)
        tb = min(tb, cap)
    pad_bs = ((bs + tb - 1) // tb) * tb
    return tb, pad_bs


def _vmem_budget_bytes(tb, sh, x_itemsize, const_bytes, n_const_buffers):
    in_blk = tb * sh * x_itemsize
    out_blk = in_blk
    scale_f32 = tb * sh * 4                      # full-block f32 scale temp
    budget = 2 * in_blk + 2 * out_blk + scale_f32 + n_const_buffers * const_bytes
    budget += 2 << 20                            # compiler scratch / headroom
    return int(min(max(budget, 8 << 20), 56 << 20))


# ----------------------------------------------------------------------------- wrapper
def _build_se_call(pad_bs, sh, s, w1t_shape, w2t_shape, tb, x_dtype, h,
                   const_bytes, optimized):
    big_prec = lax.Precision.HIGH if optimized else lax.Precision.HIGHEST
    kernel = functools.partial(_se_kernel, inv_h=1.0 / h,
                               big_dot_precision=big_prec)

    def const_spec(shape):
        if optimized:
            # Constants never change across grid steps -> single buffer.
            return pl.BlockSpec(shape, lambda b: (0, 0),
                                pipeline_mode=pl.Buffered(1))
        return pl.BlockSpec(shape, lambda b: (0, 0))

    vmem_limit = _vmem_budget_bytes(tb, sh, jnp.dtype(x_dtype).itemsize,
                                    const_bytes, 1 if optimized else 2)

    return pl.pallas_call(
        kernel,
        out_shape=jax.ShapeDtypeStruct((pad_bs, sh), x_dtype),
        grid_spec=pltpu.PrefetchScalarGridSpec(
            num_scalar_prefetch=0,
            grid=(pad_bs // tb,),
            in_specs=[
                pl.BlockSpec((tb, sh), lambda b: (b, 0)),   # x (streamed)
                const_spec((sh, s)),                        # 0/1 pooling matrix
                const_spec((s, sh)),                        # 0/1 expansion matrix
                const_spec(w1t_shape),                      # (S, S//r)
                const_spec(w2t_shape),                      # (S//r, S)
            ],
            out_specs=pl.BlockSpec((tb, sh), lambda b: (b, 0)),
        ),
        compiler_params=pltpu.CompilerParams(
            dimension_semantics=("parallel",),
            vmem_limit_bytes=vmem_limit,
        ),
    )


def se_layer(x, w1, w2):
    """x: (bs, s, h); w1: (s//r, s), w2: (s, s//r) in PyTorch Linear layout."""
    bs, s, h = x.shape
    sh = s * h

    # Lane-dense 2-D view of x (contiguous reshape: free in HBM).
    x2 = x.reshape(bs, sh)

    # Constant squeeze/expand matrices (0/1 entries; resident in VMEM).
    pool = jnp.repeat(jnp.eye(s, dtype=x.dtype), h, axis=0)       # (S*H, S)
    expand = jnp.repeat(jnp.eye(s, dtype=jnp.float32), h, axis=1)  # (S, S*H)

    # Pre-transposed, pre-cast excitation weights (compute in f32).
    w1_t = jnp.asarray(w1, jnp.float32).T                          # (S, S//r)
    w2_t = jnp.asarray(w2, jnp.float32).T                          # (S//r, S)

    num_tc = _num_tensorcores()
    row_bytes = sh * x.dtype.itemsize
    tb, pad_bs = _pick_batch_tile(bs, row_bytes, num_tc)
    if pad_bs != bs:
        x2 = jnp.pad(x2, ((0, pad_bs - bs), (0, 0)))

    const_bytes = sum(int(a.size) * a.dtype.itemsize
                      for a in (pool, expand, w1_t, w2_t))

    args = (x2, pool, expand, w1_t, w2_t)
    out2 = None
    last_err = None
    # Try the optimized variant (Precision.HIGH big dots, single-buffered
    # constants); if this jax/Mosaic version rejects it, fall back to the
    # conservative, known-good variant (HIGHEST, default double buffering).
    for optimized in (True, False):
        try:
            call = _build_se_call(pad_bs, sh, s, w1_t.shape, w2_t.shape, tb,
                                  x.dtype, h, const_bytes, optimized)
            out2 = jax.block_until_ready(call(*args))
            break
        except Exception as e:  # noqa: BLE001 - fall back to conservative build
            last_err = e
            out2 = None
    if out2 is None:
        raise last_err

    return out2[:bs].reshape(bs, s, h)


def se_layer_ref(x, w1, w2):
    """Pure-JAX reference mirroring the PyTorch forward (f32 math)."""
    xf = x.astype(jnp.float32)
    y = jnp.mean(xf, axis=-1)                                              # (bs, s)
    y = jnp.maximum(jnp.dot(y, w1.T, precision=lax.Precision.HIGHEST), 0.0)
    y = jax.nn.sigmoid(jnp.dot(y, w2.T, precision=lax.Precision.HIGHEST))  # (bs, s)
    return (xf * y[:, :, None]).astype(x.dtype)


if __name__ == "__main__":
    # TODO(synk): use_max_pooling=True variant (AdaptiveMaxPool1d) not implemented;
    # the module default (avg pooling) is what this kernel computes.
    bs, s, h, r = 16, 8, 32, 4   # module arg c == s == 8, reduction r == 4
    key = jax.random.PRNGKey(0)
    kx, k1, k2 = jax.random.split(key, 3)

    x = jax.random.normal(kx, (bs, s, h), dtype=jnp.float32)
    # Deterministic synthetic weights in PyTorch Linear layout (out_features, in_features).
    w1 = jax.random.normal(k1, (s // r, s), dtype=jnp.float32) * (1.0 / jnp.sqrt(s))
    w2 = jax.random.normal(k2, (s, s // r), dtype=jnp.float32) * (1.0 / jnp.sqrt(s // r))

    out = jax.block_until_ready(se_layer(x, w1, w2))
    ref = se_layer_ref(x, w1, w2)

    assert out.shape == (bs, s, h)
    max_err = float(jnp.max(jnp.abs(out - ref)))
    assert jnp.allclose(out, ref, atol=2e-3, rtol=2e-3), f"mismatch vs reference: {max_err}"

    print("KERNEL_OK")
</pallas_src>

<mosaic_0001>
module attributes {stable_mosaic.version = 11 : i64} {
  func.func @_se_kernel(%arg0: i32, %arg1: memref<16x256xf32, #tpu.memory_space<vmem>>, %arg2: memref<256x8xf32, #tpu.memory_space<vmem>>, %arg3: memref<8x256xf32, #tpu.memory_space<vmem>>, %arg4: memref<8x2xf32, #tpu.memory_space<vmem>>, %arg5: memref<2x8xf32, #tpu.memory_space<vmem>>, %arg6: memref<16x256xf32, #tpu.memory_space<vmem>>) attributes {dimension_semantics = [#tpu.dimension_semantics<parallel>], iteration_bounds = array<i64: 1>, scalar_prefetch = 0 : i64, scratch_operands = 0 : i64, tpu.core_type = #tpu.core_type<tc>, window_params = [{transform_indices = @transform_0, window_bounds = array<i64: 16, 256>}, {pipeline_mode = #tpu.pipeline_mode<synchronous>, transform_indices = @transform_1, window_bounds = array<i64: 256, 8>}, {pipeline_mode = #tpu.pipeline_mode<synchronous>, transform_indices = @transform_2, window_bounds = array<i64: 8, 256>}, {pipeline_mode = #tpu.pipeline_mode<synchronous>, transform_indices = @transform_3, window_bounds = array<i64: 8, 2>}, {pipeline_mode = #tpu.pipeline_mode<synchronous>, transform_indices = @transform_4, window_bounds = array<i64: 2, 8>}, {transform_indices = @transform_5, window_bounds = array<i64: 16, 256>}]} {
    %c0 = arith.constant 0 : index
    %c0_0 = arith.constant 0 : index
    %0 = vector.load %arg1[%c0, %c0_0] : memref<16x256xf32, #tpu.memory_space<vmem>>, vector<16x256xf32>
    %c0_1 = arith.constant 0 : index
    %c0_2 = arith.constant 0 : index
    %1 = vector.load %arg2[%c0_1, %c0_2] : memref<256x8xf32, #tpu.memory_space<vmem>>, vector<256x8xf32>
    %cst = arith.constant dense<0.000000e+00> : vector<16x8xf32>
    %2 = tpu.matmul %0, %1, %cst {dimension_numbers = #tpu.dot_dimension_numbers<[1], [0], [0], [1], [0, 0, 1, 1], [], []>, precision = #tpu.contract_precision<fp32>} : vector<16x256xf32>, vector<256x8xf32>, vector<16x8xf32> -> vector<16x8xf32>
    %cst_3 = arith.constant 3.125000e-02 : f32
    %3 = vector.broadcast %cst_3 : f32 to vector<16x8xf32>
    %4 = arith.mulf %2, %3 : vector<16x8xf32>
    %c0_4 = arith.constant 0 : index
    %c0_5 = arith.constant 0 : index
    %5 = vector.load %arg4[%c0_4, %c0_5] : memref<8x2xf32, #tpu.memory_space<vmem>>, vector<8x2xf32>
    %cst_6 = arith.constant dense<0.000000e+00> : vector<16x2xf32>
    %6 = tpu.matmul %4, %5, %cst_6 {dimension_numbers = #tpu.dot_dimension_numbers<[1], [0], [0], [1], [0, 0, 1, 1], [], []>, precision = #tpu.contract_precision<fp32>} : vector<16x8xf32>, vector<8x2xf32>, vector<16x2xf32> -> vector<16x2xf32>
    %cst_7 = arith.constant 0.000000e+00 : f32
    %7 = vector.broadcast %cst_7 : f32 to vector<16x2xf32>
    %8 = arith.maximumf %6, %7 : vector<16x2xf32>
    %c0_8 = arith.constant 0 : index
    %c0_9 = arith.constant 0 : index
    %9 = vector.load %arg5[%c0_8, %c0_9] : memref<2x8xf32, #tpu.memory_space<vmem>>, vector<2x8xf32>
    %cst_10 = arith.constant dense<0.000000e+00> : vector<16x8xf32>
    %10 = tpu.matmul %8, %9, %cst_10 {dimension_numbers = #tpu.dot_dimension_numbers<[1], [0], [0], [1], [0, 0, 1, 1], [], []>, precision = #tpu.contract_precision<fp32>} : vector<16x2xf32>, vector<2x8xf32>, vector<16x8xf32> -> vector<16x8xf32>
    %11 = arith.negf %10 : vector<16x8xf32>
    %12 = math.exp %11 : vector<16x8xf32>
    %cst_11 = arith.constant 1.000000e+00 : f32
    %13 = vector.broadcast %cst_11 : f32 to vector<16x8xf32>
    %14 = arith.addf %13, %12 : vector<16x8xf32>
    %15 = arith.divf %13, %14 : vector<16x8xf32>
    %c0_12 = arith.constant 0 : index
    %c0_13 = arith.constant 0 : index
    %16 = vector.load %arg3[%c0_12, %c0_13] : memref<8x256xf32, #tpu.memory_space<vmem>>, vector<8x256xf32>
    %cst_14 = arith.constant dense<0.000000e+00> : vector<16x256xf32>
    %17 = tpu.matmul %15, %16, %cst_14 {dimension_numbers = #tpu.dot_dimension_numbers<[1], [0], [0], [1], [0, 0, 1, 1], [], []>, precision = #tpu.contract_precision<fp32>} : vector<16x8xf32>, vector<8x256xf32>, vector<16x256xf32> -> vector<16x256xf32>
    %18 = arith.mulf %0, %17 : vector<16x256xf32>
    %c0_15 = arith.constant 0 : index
    %c0_16 = arith.constant 0 : index
    %19 = vector.load %arg6[%c0_15, %c0_16] : memref<16x256xf32, #tpu.memory_space<vmem>>, vector<16x256xf32>
    tpu.vector_store %arg6[%c0_15, %c0_16], %18 {strides = array<i32>} : memref<16x256xf32, #tpu.memory_space<vmem>>, vector<16x256xf32>,
    return
  }
  func.func @transform_0(%arg0: i32) -> (i32, i32) {
    %c0_i32 = arith.constant 0 : i32
    %c0_i32_0 = arith.constant 0 : i32
    return %arg0, %c0_i32 : i32, i32
  }
  func.func @transform_1(%arg0: i32) -> (i32, i32) {
    %c0_i32 = arith.constant 0 : i32
    %c0_i32_0 = arith.constant 0 : i32
    %c0_i32_1 = arith.constant 0 : i32
    return %c0_i32, %c0_i32_0 : i32, i32
  }
  func.func @transform_2(%arg0: i32) -> (i32, i32) {
    %c0_i32 = arith.constant 0 : i32
    %c0_i32_0 = arith.constant 0 : i32
    %c0_i32_1 = arith.constant 0 : i32
    return %c0_i32, %c0_i32_0 : i32, i32
  }
  func.func @transform_3(%arg0: i32) -> (i32, i32) {
    %c0_i32 = arith.constant 0 : i32
    %c0_i32_0 = arith.constant 0 : i32
    %c0_i32_1 = arith.constant 0 : i32
    return %c0_i32, %c0_i32_0 : i32, i32
  }
  func.func @transform_4(%arg0: i32) -> (i32, i32) {
    %c0_i32 = arith.constant 0 : i32
    %c0_i32_0 = arith.constant 0 : i32
    %c0_i32_1 = arith.constant 0 : i32
    return %c0_i32, %c0_i32_0 : i32, i32
  }
  func.func @transform_5(%arg0: i32) -> (i32, i32) {
    %c0_i32 = arith.constant 0 : i32
    %c0_i32_0 = arith.constant 0 : i32
    return %arg0, %c0_i32 : i32, i32
  }
}

</mosaic_0001>

<llo_original>
// kernel: tpu_custom_call.1
$region0: #{tpu_custom_call.1}
  #allocation0 [shape = 'u32[]', space=smem, size = 0x4, offset = 0x4, fixed_abs, tag = 'smem constant byte address 0x4 - core index']
  #allocation1 [shape = 'u32[144,128]{1,0:T(1,128)}', space=vmem, size = 0x12000, scoped, tag = 'internal scratch']
  %s0 = inlined_call_operand.vmem [shape: f32[16,256], index: 0, kind: input, shape index: {}]
  %s1 = inlined_call_operand.vmem [shape: f32[256,8], index: 1, kind: input, shape index: {}]
  %s2 = inlined_call_operand.vmem [shape: f32[8,256], index: 2, kind: input, shape index: {}]
  %s3 = inlined_call_operand.vmem [shape: f32[8,2], index: 3, kind: input, shape index: {}]
  %s4 = inlined_call_operand.vmem [shape: f32[2,8], index: 4, kind: input, shape index: {}]
  %s5 = inlined_call_operand.hbm [shape: f32[16,256], index: 5, kind: output, shape index: {}]
  %s6 = sld [smem:[#allocation0]]
  $region30: #{tpu_custom_call.1} parent=0
    _
  %s8 = ssub.s32 1, %s6
  %s9 = scalar_select 0, %s8, %s6
  $region1: #{tpu_custom_call.1} parent=0
    #allocation2 [shape = 'u8[16384]{0}', space=vmem, size = 0x4000, scoped, tag = 'output window, operand 0, single buffered']
    #allocation3 [shape = 's32[1]{0}', space=sflag, size = 0x4, scoped, tag = 'scoped memory for tpu_custom_call.1']
    %10 = vsyncpa [#allocation3], 0
    // Predicated region
    $region2: #{tpu_custom_call.1} parent=1 // pred_check
      _
    $region3: #{tpu_custom_call.1} parent=1 // pred_check_branch
      %12 = sbr.rel (0) target = $region5
    $region4: #{tpu_custom_call.1} parent=1 // pred_region
      _
    $region5: #{tpu_custom_call.1} parent=1 // pred_fallthru
      _
    // Predicated region
    $region6: #{tpu_custom_call.1} parent=1 // pred_check
      _
    $region7: #{tpu_custom_call.1} parent=1 // pred_check_branch
      %14 = sbr.rel (0) target = $region9
    $region8: #{tpu_custom_call.1} parent=1 // pred_region
      _
    $region9: #{tpu_custom_call.1} parent=1 // pred_fallthru
      _
    // Predicated region
    $region10: #{tpu_custom_call.1} parent=1 // pred_check
      _
    $region11: #{tpu_custom_call.1} parent=1 // pred_check_branch
      %16 = sbr.rel (0) target = $region13
    $region12: #{tpu_custom_call.1} parent=1 // pred_region
      _
    $region13: #{tpu_custom_call.1} parent=1 // pred_fallthru
      _
    // Predicated region
    $region14: #{tpu_custom_call.1} parent=1 // pred_check
      _
    $region15: #{tpu_custom_call.1} parent=1 // pred_check_branch
      %18 = sbr.rel (0) target = $region17
    $region16: #{tpu_custom_call.1} parent=1 // pred_region
      _
    $region17: #{tpu_custom_call.1} parent=1 // pred_fallthru
      _
    // Predicated region
    $region18: #{tpu_custom_call.1} parent=1 // pred_check
      _
    $region19: #{tpu_custom_call.1} parent=1 // pred_check_branch
      %20 = sbr.rel (0) target = $region21
    $region20: #{tpu_custom_call.1} parent=1 // pred_region
      _
    $region21: #{tpu_custom_call.1} parent=1 // pred_fallthru
      _
    %v21 = vld [vmem:[%s0] sm:$0xff]
    %v22 = vld [vmem:[%s0 + $0x8] sm:$0xff]
    %v23 = vld [vmem:[%s0 + $0x10] sm:$0xff]
    %v24 = vld [vmem:[%s0 + $0x18] sm:$0xff]
    %v25 = vld [vmem:[%s1] sm:$0xff]
    %v26 = vld [vmem:[%s1 + $0x8] sm:$0xff]
    %v27 = vld [vmem:[%s1 + $0x10] sm:$0xff]
    %v28 = vld [vmem:[%s1 + $0x18] sm:$0xff]
    %v29 = vld [vmem:[%s1 + $0x20] sm:$0xff]
    %v30 = vld [vmem:[%s1 + $0x28] sm:$0xff]
    %v31 = vld [vmem:[%s1 + $0x30] sm:$0xff]
    %v32 = vld [vmem:[%s1 + $0x38] sm:$0xff]
    %v33 = vld [vmem:[%s1 + $0x40] sm:$0xff]
    %v34 = vld [vmem:[%s1 + $0x48] sm:$0xff]
    %v35 = vld [vmem:[%s1 + $0x50] sm:$0xff]
    %v36 = vld [vmem:[%s1 + $0x58] sm:$0xff]
    %v37 = vld [vmem:[%s1 + $0x60] sm:$0xff]
    %v38 = vld [vmem:[%s1 + $0x68] sm:$0xff]
    %v39 = vld [vmem:[%s1 + $0x70] sm:$0xff]
    %v40 = vld [vmem:[%s1 + $0x78] sm:$0xff]
    %v41 = vld [vmem:[%s1 + $0x80] sm:$0xff]
    %v42 = vld [vmem:[%s1 + $0x88] sm:$0xff]
    %v43 = vld [vmem:[%s1 + $0x90] sm:$0xff]
    %v44 = vld [vmem:[%s1 + $0x98] sm:$0xff]
    %v45 = vld [vmem:[%s1 + $0xa0] sm:$0xff]
    %v46 = vld [vmem:[%s1 + $0xa8] sm:$0xff]
    %v47 = vld [vmem:[%s1 + $0xb0] sm:$0xff]
    %v48 = vld [vmem:[%s1 + $0xb8] sm:$0xff]
    %v49 = vld [vmem:[%s1 + $0xc0] sm:$0xff]
    %v50 = vld [vmem:[%s1 + $0xc8] sm:$0xff]
    %v51 = vld [vmem:[%s1 + $0xd0] sm:$0xff]
    %v52 = vld [vmem:[%s1 + $0xd8] sm:$0xff]
    %v53 = vld [vmem:[%s1 + $0xe0] sm:$0xff]
    %v54 = vld [vmem:[%s1 + $0xe8] sm:$0xff]
    %v55 = vld [vmem:[%s1 + $0xf0] sm:$0xff]
    %v56 = vld [vmem:[%s1 + $0xf8] sm:$0xff]
    %57 = vmatprep.subr.mxu0 0.0
    %v58 = vand.u32 %v40, 4294901760
    %59 = vmatpush1.msra.mxu0 %v58
    %60 = vmatprep.subr.mxu0 0.0
    %v61 = vand.u32 %v39, 4294901760
    %62 = vmatpush1.msra.mxu0 %v61
    %63 = vmatprep.subr.mxu0 0.0
    %v64 = vand.u32 %v38, 4294901760
    %65 = vmatpush1.msra.mxu0 %v64
    %66 = vmatprep.subr.mxu0 0.0
    %v67 = vand.u32 %v37, 4294901760
    %68 = vmatpush1.msra.mxu0 %v67
    %69 = vmatprep.subr.mxu0 0.0
    %v70 = vand.u32 %v36, 4294901760
    %71 = vmatpush1.msra.mxu0 %v70
    %72 = vmatprep.subr.mxu0 0.0
    %v73 = vand.u32 %v35, 4294901760
    %74 = vmatpush1.msra.mxu0 %v73
    %75 = vmatprep.subr.mxu0 0.0
    %v76 = vand.u32 %v34, 4294901760
    %77 = vmatpush1.msra.mxu0 %v76
    %78 = vmatprep.subr.mxu0 0.0
    %v79 = vand.u32 %v33, 4294901760
    %80 = vmatpush1.msra.mxu0 %v79
    %81 = vmatprep.subr.mxu0 0.0
    %v82 = vand.u32 %v32, 4294901760
    %83 = vmatpush1.msra.mxu0 %v82
    %84 = vmatprep.subr.mxu0 0.0
    %v85 = vand.u32 %v31, 4294901760
    %86 = vmatpush1.msra.mxu0 %v85
    %87 = vmatprep.subr.mxu0 0.0
    %v88 = vand.u32 %v30, 4294901760
    %89 = vmatpush1.msra.mxu0 %v88
    %90 = vmatprep.subr.mxu0 0.0
    %v91 = vand.u32 %v29, 4294901760
    %92 = vmatpush1.msra.mxu0 %v91
    %93 = vmatprep.subr.mxu0 0.0
    %v94 = vand.u32 %v28, 4294901760
    %95 = vmatpush1.msra.mxu0 %v94
    %96 = vmatprep.subr.mxu0 0.0
    %v97 = vand.u32 %v27, 4294901760
    %98 = vmatpush1.msra.mxu0 %v97
    %99 = vmatprep.subr.mxu0 0.0
    %v100 = vand.u32 %v26, 4294901760
    %101 = vmatpush1.msra.mxu0 %v100
    %102 = vmatprep.subr.mxu0 0.0
    %v103 = vand.u32 %v25, 4294901760
    %104 = vmatpush1.msra.mxu0 %v103
    %105 = vmatprep.subr.mxu0 0.0
    %v106 = vand.u32 %v56, 4294901760
    %107 = vmatpush2.msra.mxu0 %v106
    %108 = vmatprep.subr.mxu0 0.0
    %v109 = vand.u32 %v55, 4294901760
    %110 = vmatpush2.msra.mxu0 %v109
    %111 = vmatprep.subr.mxu0 0.0
    %v112 = vand.u32 %v54, 4294901760
    %113 = vmatpush2.msra.mxu0 %v112
    %114 = vmatprep.subr.mxu0 0.0
    %v115 = vand.u32 %v53, 4294901760
    %116 = vmatpush2.msra.mxu0 %v115
    %117 = vmatprep.subr.mxu0 0.0
    %v118 = vand.u32 %v52, 4294901760
    %119 = vmatpush2.msra.mxu0 %v118
    %120 = vmatprep.subr.mxu0 0.0
    %v121 = vand.u32 %v51, 4294901760
    %122 = vmatpush2.msra.mxu0 %v121
    %123 = vmatprep.subr.mxu0 0.0
    %v124 = vand.u32 %v50, 4294901760
    %125 = vmatpush2.msra.mxu0 %v124
    %126 = vmatprep.subr.mxu0 0.0
    %v127 = vand.u32 %v49, 4294901760
    %128 = vmatpush2.msra.mxu0 %v127
    %129 = vmatprep.subr.mxu0 0.0
    %v130 = vand.u32 %v48, 4294901760
    %131 = vmatpush2.msra.mxu0 %v130
    %132 = vmatprep.subr.mxu0 0.0
    %v133 = vand.u32 %v47, 4294901760
    %134 = vmatpush2.msra.mxu0 %v133
    %135 = vmatprep.subr.mxu0 0.0
    %v136 = vand.u32 %v46, 4294901760
    %137 = vmatpush2.msra.mxu0 %v136
    %138 = vmatprep.subr.mxu0 0.0
    %v139 = vand.u32 %v45, 4294901760
    %140 = vmatpush2.msra.mxu0 %v139
    %141 = vmatprep.subr.mxu0 0.0
    %v142 = vand.u32 %v44, 4294901760
    %143 = vmatpush2.msra.mxu0 %v142
    %144 = vmatprep.subr.mxu0 0.0
    %v145 = vand.u32 %v43, 4294901760
    %146 = vmatpush2.msra.mxu0 %v145
    %147 = vmatprep.subr.mxu0 0.0
    %v148 = vand.u32 %v42, 4294901760
    %149 = vmatpush2.msra.mxu0 %v148
    %150 = vmatprep.subr.mxu0 0.0
    %v151 = vand.u32 %v41, 4294901760
    %152 = vmatpush2.msra.mxu0 %v151
    %v153 = vand.u32 %v22, 4294901760
    %v154 = vsub.f32 %v22, %v153
    %v155 = vand.u32 %v154, 4294901760
    %v156 = vsub.f32 %v154, %v155
    %v157 = vand.u32 %v156, 4294901760
    %158 = vmatprep.mubr.f32.mxu0 %v157
    %v159 = vand.u32 %v21, 4294901760
    %v160 = vsub.f32 %v21, %v159
    %v161 = vand.u32 %v160, 4294901760
    %v162 = vsub.f32 %v160, %v161
    %v163 = vand.u32 %v162, 4294901760
    %164 = vmatmul.mubr.f32.gmra.mxu0 %v163
    %v165 = vpop.f32.mrf.mxu0
    %v166 = vadd.f32 0.0, %v165
    %v167 = vpop.f32.mrf.mxu0
    %v168 = vand.u32 %v24, 4294901760
    %v169 = vsub.f32 %v24, %v168
    %v170 = vand.u32 %v169, 4294901760
    %v171 = vsub.f32 %v169, %v170
    %v172 = vand.u32 %v171, 4294901760
    %173 = vmatprep.mubr.f32.mxu0 %v172
    %v174 = vand.u32 %v23, 4294901760
    %v175 = vsub.f32 %v23, %v174
    %v176 = vand.u32 %v175, 4294901760
    %v177 = vsub.f32 %v175, %v176
    %v178 = vand.u32 %v177, 4294901760
    %179 = vmatmul.mubr.f32.gmra.mxu0 %v178
    %v180 = vpop.f32.mrf.mxu0
    %v181 = vadd.f32 0.0, %v180
    %v182 = vpop.f32.mrf.mxu0
    %183 = vdwg.mxu0
    %184 = vmatprep.subr.mxu0 0.0
    %v185 = vand.u32 %v40, 4294901760
    %v186 = vsub.f32 %v40, %v185
    %v187 = vand.u32 %v186, 4294901760
    %v188 = vsub.f32 %v186, %v187
    %v189 = vand.u32 %v188, 4294901760
    %190 = vmatpush1.msra.mxu0 %v189
    %191 = vmatprep.subr.mxu0 0.0
    %v192 = vand.u32 %v39, 4294901760
    %v193 = vsub.f32 %v39, %v192
    %v194 = vand.u32 %v193, 4294901760
    %v195 = vsub.f32 %v193, %v194
    %v196 = vand.u32 %v195, 4294901760
    %197 = vmatpush1.msra.mxu0 %v196
    %198 = vmatprep.subr.mxu0 0.0
    %v199 = vand.u32 %v38, 4294901760
    %v200 = vsub.f32 %v38, %v199
    %v201 = vand.u32 %v200, 4294901760
    %v202 = vsub.f32 %v200, %v201
    %v203 = vand.u32 %v202, 4294901760
    %204 = vmatpush1.msra.mxu0 %v203
    %205 = vmatprep.subr.mxu0 0.0
    %v206 = vand.u32 %v37, 4294901760
    %v207 = vsub.f32 %v37, %v206
    %v208 = vand.u32 %v207, 4294901760
    %v209 = vsub.f32 %v207, %v208
    %v210 = vand.u32 %v209, 4294901760
    %211 = vmatpush1.msra.mxu0 %v210
    %212 = vmatprep.subr.mxu0 0.0
    %v213 = vand.u32 %v36, 4294901760
    %v214 = vsub.f32 %v36, %v213
    %v215 = vand.u32 %v214, 4294901760
    %v216 = vsub.f32 %v214, %v215
    %v217 = vand.u32 %v216, 4294901760
    %218 = vmatpush1.msra.mxu0 %v217
    %219 = vmatprep.subr.mxu0 0.0
    %v220 = vand.u32 %v35, 4294901760
    %v221 = vsub.f32 %v35, %v220
    %v222 = vand.u32 %v221, 4294901760
    %v223 = vsub.f32 %v221, %v222
    %v224 = vand.u32 %v223, 4294901760
    %225 = vmatpush1.msra.mxu0 %v224
    %226 = vmatprep.subr.mxu0 0.0
    %v227 = vand.u32 %v34, 4294901760
    %v228 = vsub.f32 %v34, %v227
    %v229 = vand.u32 %v228, 4294901760
    %v230 = vsub.f32 %v228, %v229
    %v231 = vand.u32 %v230, 4294901760
    %232 = vmatpush1.msra.mxu0 %v231
    %233 = vmatprep.subr.mxu0 0.0
    %v234 = vand.u32 %v33, 4294901760
    %v235 = vsub.f32 %v33, %v234
    %v236 = vand.u32 %v235, 4294901760
    %v237 = vsub.f32 %v235, %v236
    %v238 = vand.u32 %v237, 4294901760
    %239 = vmatpush1.msra.mxu0 %v238
    %240 = vmatprep.subr.mxu0 0.0
    %v241 = vand.u32 %v32, 4294901760
    %v242 = vsub.f32 %v32, %v241
    %v243 = vand.u32 %v242, 4294901760
    %v244 = vsub.f32 %v242, %v243
    %v245 = vand.u32 %v244, 4294901760
    %246 = vmatpush1.msra.mxu0 %v245
    %247 = vmatprep.subr.mxu0 0.0
    %v248 = vand.u32 %v31, 4294901760
    %v249 = vsub.f32 %v31, %v248
    %v250 = vand.u32 %v249, 4294901760
    %v251 = vsub.f32 %v249, %v250
    %v252 = vand.u32 %v251, 4294901760
    %253 = vmatpush1.msra.mxu0 %v252
    %254 = vmatprep.subr.mxu0 0.0
    %v255 = vand.u32 %v30, 4294901760
    %v256 = vsub.f32 %v30, %v255
    %v257 = vand.u32 %v256, 4294901760
    %v258 = vsub.f32 %v256, %v257
    %v259 = vand.u32 %v258, 4294901760
    %260 = vmatpush1.msra.mxu0 %v259
    %261 = vmatprep.subr.mxu0 0.0
    %v262 = vand.u32 %v29, 4294901760
    %v263 = vsub.f32 %v29, %v262
    %v264 = vand.u32 %v263, 4294901760
    %v265 = vsub.f32 %v263, %v264
    %v266 = vand.u32 %v265, 4294901760
    %267 = vmatpush1.msra.mxu0 %v266
    %268 = vmatprep.subr.mxu0 0.0
    %v269 = vand.u32 %v28, 4294901760
    %v270 = vsub.f32 %v28, %v269
    %v271 = vand.u32 %v270, 4294901760
    %v272 = vsub.f32 %v270, %v271
    %v273 = vand.u32 %v272, 4294901760
    %274 = vmatpush1.msra.mxu0 %v273
    %275 = vmatprep.subr.mxu0 0.0
    %v276 = vand.u32 %v27, 4294901760
    %v277 = vsub.f32 %v27, %v276
    %v278 = vand.u32 %v277, 4294901760
    %v279 = vsub.f32 %v277, %v278
    %v280 = vand.u32 %v279, 4294901760
    %281 = vmatpush1.msra.mxu0 %v280
    %282 = vmatprep.subr.mxu0 0.0
    %v283 = vand.u32 %v26, 4294901760
    %v284 = vsub.f32 %v26, %v283
    %v285 = vand.u32 %v284, 4294901760
    %v286 = vsub.f32 %v284, %v285
    %v287 = vand.u32 %v286, 4294901760
    %288 = vmatpush1.msra.mxu0 %v287
    %289 = vmatprep.subr.mxu0 0.0
    %v290 = vand.u32 %v25, 4294901760
    %v291 = vsub.f32 %v25, %v290
    %v292 = vand.u32 %v291, 4294901760
    %v293 = vsub.f32 %v291, %v292
    %v294 = vand.u32 %v293, 4294901760
    %295 = vmatpush1.msra.mxu0 %v294
    %296 = vmatprep.subr.mxu0 0.0
    %v297 = vand.u32 %v56, 4294901760
    %v298 = vsub.f32 %v56, %v297
    %v299 = vand.u32 %v298, 4294901760
    %v300 = vsub.f32 %v298, %v299
    %v301 = vand.u32 %v300, 4294901760
    %302 = vmatpush2.msra.mxu0 %v301
    %303 = vmatprep.subr.mxu0 0.0
    %v304 = vand.u32 %v55, 4294901760
    %v305 = vsub.f32 %v55, %v304
    %v306 = vand.u32 %v305, 4294901760
    %v307 = vsub.f32 %v305, %v306
    %v308 = vand.u32 %v307, 4294901760
    %309 = vmatpush2.msra.mxu0 %v308
    %310 = vmatprep.subr.mxu0 0.0
    %v311 = vand.u32 %v54, 4294901760
    %v312 = vsub.f32 %v54, %v311
    %v313 = vand.u32 %v312, 4294901760
    %v314 = vsub.f32 %v312, %v313
    %v315 = vand.u32 %v314, 4294901760
    %316 = vmatpush2.msra.mxu0 %v315
    %317 = vmatprep.subr.mxu0 0.0
    %v318 = vand.u32 %v53, 4294901760
    %v319 = vsub.f32 %v53, %v318
    %v320 = vand.u32 %v319, 4294901760
    %v321 = vsub.f32 %v319, %v320
    %v322 = vand.u32 %v321, 4294901760
    %323 = vmatpush2.msra.mxu0 %v322
    %324 = vmatprep.subr.mxu0 0.0
    %v325 = vand.u32 %v52, 4294901760
    %v326 = vsub.f32 %v52, %v325
    %v327 = vand.u32 %v326, 4294901760
    %v328 = vsub.f32 %v326, %v327
    %v329 = vand.u32 %v328, 4294901760
    %330 = vmatpush2.msra.mxu0 %v329
    %331 = vmatprep.subr.mxu0 0.0
    %v332 = vand.u32 %v51, 4294901760
    %v333 = vsub.f32 %v51, %v332
    %v334 = vand.u32 %v333, 4294901760
    %v335 = vsub.f32 %v333, %v334
    %v336 = vand.u32 %v335, 4294901760
    %337 = vmatpush2.msra.mxu0 %v336
    %338 = vmatprep.subr.mxu0 0.0
    %v339 = vand.u32 %v50, 4294901760
    %v340 = vsub.f32 %v50, %v339
    %v341 = vand.u32 %v340, 4294901760
    %v342 = vsub.f32 %v340, %v341
    %v343 = vand.u32 %v342, 4294901760
    %344 = vmatpush2.msra.mxu0 %v343
    %345 = vmatprep.subr.mxu0 0.0
    %v346 = vand.u32 %v49, 4294901760
    %v347 = vsub.f32 %v49, %v346
    %v348 = vand.u32 %v347, 4294901760
    %v349 = vsub.f32 %v347, %v348
    %v350 = vand.u32 %v349, 4294901760
    %351 = vmatpush2.msra.mxu0 %v350
    %352 = vmatprep.subr.mxu0 0.0
    %v353 = vand.u32 %v48, 4294901760
    %v354 = vsub.f32 %v48, %v353
    %v355 = vand.u32 %v354, 4294901760
    %v356 = vsub.f32 %v354, %v355
    %v357 = vand.u32 %v356, 4294901760
    %358 = vmatpush2.msra.mxu0 %v357
    %359 = vmatprep.subr.mxu0 0.0
    %v360 = vand.u32 %v47, 4294901760
    %v361 = vsub.f32 %v47, %v360
    %v362 = vand.u32 %v361, 4294901760
    %v363 = vsub.f32 %v361, %v362
    %v364 = vand.u32 %v363, 4294901760
    %365 = vmatpush2.msra.mxu0 %v364
    %366 = vmatprep.subr.mxu0 0.0
    %v367 = vand.u32 %v46, 4294901760
    %v368 = vsub.f32 %v46, %v367
    %v369 = vand.u32 %v368, 4294901760
    %v370 = vsub.f32 %v368, %v369
    %v371 = vand.u32 %v370, 4294901760
    %372 = vmatpush2.msra.mxu0 %v371
    %373 = vmatprep.subr.mxu0 0.0
    %v374 = vand.u32 %v45, 4294901760
    %v375 = vsub.f32 %v45, %v374
    %v376 = vand.u32 %v375, 4294901760
    %v377 = vsub.f32 %v375, %v376
    %v378 = vand.u32 %v377, 4294901760
    %379 = vmatpush2.msra.mxu0 %v378
    %380 = vmatprep.subr.mxu0 0.0
    %v381 = vand.u32 %v44, 4294901760
    %v382 = vsub.f32 %v44, %v381
    %v383 = vand.u32 %v382, 4294901760
    %v384 = vsub.f32 %v382, %v383
    %v385 = vand.u32 %v384, 4294901760
    %386 = vmatpush2.msra.mxu0 %v385
    %387 = vmatprep.subr.mxu0 0.0
    %v388 = vand.u32 %v43, 4294901760
    %v389 = vsub.f32 %v43, %v388
    %v390 = vand.u32 %v389, 4294901760
    %v391 = vsub.f32 %v389, %v390
    %v392 = vand.u32 %v391, 4294901760
    %393 = vmatpush2.msra.mxu0 %v392
    %394 = vmatprep.subr.mxu0 0.0
    %v395 = vand.u32 %v42, 4294901760
    %v396 = vsub.f32 %v42, %v395
    %v397 = vand.u32 %v396, 4294901760
    %v398 = vsub.f32 %v396, %v397
    %v399 = vand.u32 %v398, 4294901760
    %400 = vmatpush2.msra.mxu0 %v399
    %401 = vmatprep.subr.mxu0 0.0
    %v402 = vand.u32 %v41, 4294901760
    %v403 = vsub.f32 %v41, %v402
    %v404 = vand.u32 %v403, 4294901760
    %v405 = vsub.f32 %v403, %v404
    %v406 = vand.u32 %v405, 4294901760
    %407 = vmatpush2.msra.mxu0 %v406
    %v408 = vand.u32 %v22, 4294901760
    %409 = vmatprep.mubr.f32.mxu0 %v408
    %v410 = vand.u32 %v21, 4294901760
    %411 = vmatmul.mubr.f32.gmra.mxu0 %v410
    %v412 = vpop.f32.mrf.mxu0
    %v413 = vadd.f32 %v166, %v412
    %v414 = vpop.f32.mrf.mxu0
    %v415 = vand.u32 %v24, 4294901760
    %416 = vmatprep.mubr.f32.mxu0 %v415
    %v417 = vand.u32 %v23, 4294901760
    %418 = vmatmul.mubr.f32.gmra.mxu0 %v417
    %v419 = vpop.f32.mrf.mxu0
    %v420 = vadd.f32 %v181, %v419
    %v421 = vpop.f32.mrf.mxu0
    %422 = vdwg.mxu0
    %423 = vmatprep.subr.mxu0 0.0
    %v424 = vand.u32 %v40, 4294901760
    %v425 = vsub.f32 %v40, %v424
    %426 = vmatpush1.msra.mxu0 %v425
    %427 = vmatprep.subr.mxu0 0.0
    %v428 = vand.u32 %v39, 4294901760
    %v429 = vsub.f32 %v39, %v428
    %430 = vmatpush1.msra.mxu0 %v429
    %431 = vmatprep.subr.mxu0 0.0
    %v432 = vand.u32 %v38, 4294901760
    %v433 = vsub.f32 %v38, %v432
    %434 = vmatpush1.msra.mxu0 %v433
    %435 = vmatprep.subr.mxu0 0.0
    %v436 = vand.u32 %v37, 4294901760
    %v437 = vsub.f32 %v37, %v436
    %438 = vmatpush1.msra.mxu0 %v437
    %439 = vmatprep.subr.mxu0 0.0
    %v440 = vand.u32 %v36, 4294901760
    %v441 = vsub.f32 %v36, %v440
    %442 = vmatpush1.msra.mxu0 %v441
    %443 = vmatprep.subr.mxu0 0.0
    %v444 = vand.u32 %v35, 4294901760
    %v445 = vsub.f32 %v35, %v444
    %446 = vmatpush1.msra.mxu0 %v445
    %447 = vmatprep.subr.mxu0 0.0
    %v448 = vand.u32 %v34, 4294901760
    %v449 = vsub.f32 %v34, %v448
    %450 = vmatpush1.msra.mxu0 %v449
    %451 = vmatprep.subr.mxu0 0.0
    %v452 = vand.u32 %v33, 4294901760
    %v453 = vsub.f32 %v33, %v452
    %454 = vmatpush1.msra.mxu0 %v453
    %455 = vmatprep.subr.mxu0 0.0
    %v456 = vand.u32 %v32, 4294901760
    %v457 = vsub.f32 %v32, %v456
    %458 = vmatpush1.msra.mxu0 %v457
    %459 = vmatprep.subr.mxu0 0.0
    %v460 = vand.u32 %v31, 4294901760
    %v461 = vsub.f32 %v31, %v460
    %462 = vmatpush1.msra.mxu0 %v461
    %463 = vmatprep.subr.mxu0 0.0
    %v464 = vand.u32 %v30, 4294901760
    %v465 = vsub.f32 %v30, %v464
    %466 = vmatpush1.msra.mxu0 %v465
    %467 = vmatprep.subr.mxu0 0.0
    %v468 = vand.u32 %v29, 4294901760
    %v469 = vsub.f32 %v29, %v468
    %470 = vmatpush1.msra.mxu0 %v469
    %471 = vmatprep.subr.mxu0 0.0
    %v472 = vand.u32 %v28, 4294901760
    %v473 = vsub.f32 %v28, %v472
    %474 = vmatpush1.msra.mxu0 %v473
    %475 = vmatprep.subr.mxu0 0.0
    %v476 = vand.u32 %v27, 4294901760
    %v477 = vsub.f32 %v27, %v476
    %478 = vmatpush1.msra.mxu0 %v477
    %479 = vmatprep.subr.mxu0 0.0
    %v480 = vand.u32 %v26, 4294901760
    %v481 = vsub.f32 %v26, %v480
    %482 = vmatpush1.msra.mxu0 %v481
    %483 = vmatprep.subr.mxu0 0.0
    %v484 = vand.u32 %v25, 4294901760
    %v485 = vsub.f32 %v25, %v484
    %486 = vmatpush1.msra.mxu0 %v485
    %487 = vmatprep.subr.mxu0 0.0
    %v488 = vand.u32 %v56, 4294901760
    %v489 = vsub.f32 %v56, %v488
    %490 = vmatpush2.msra.mxu0 %v489
    %491 = vmatprep.subr.mxu0 0.0
    %v492 = vand.u32 %v55, 4294901760
    %v493 = vsub.f32 %v55, %v492
    %494 = vmatpush2.msra.mxu0 %v493
    %495 = vmatprep.subr.mxu0 0.0
    %v496 = vand.u32 %v54, 4294901760
    %v497 = vsub.f32 %v54, %v496
    %498 = vmatpush2.msra.mxu0 %v497
    %499 = vmatprep.subr.mxu0 0.0
    %v500 = vand.u32 %v53, 4294901760
    %v501 = vsub.f32 %v53, %v500
    %502 = vmatpush2.msra.mxu0 %v501
    %503 = vmatprep.subr.mxu0 0.0
    %v504 = vand.u32 %v52, 4294901760
    %v505 = vsub.f32 %v52, %v504
    %506 = vmatpush2.msra.mxu0 %v505
    %507 = vmatprep.subr.mxu0 0.0
    %v508 = vand.u32 %v51, 4294901760
    %v509 = vsub.f32 %v51, %v508
    %510 = vmatpush2.msra.mxu0 %v509
    %511 = vmatprep.subr.mxu0 0.0
    %v512 = vand.u32 %v50, 4294901760
    %v513 = vsub.f32 %v50, %v512
    %514 = vmatpush2.msra.mxu0 %v513
    %515 = vmatprep.subr.mxu0 0.0
    %v516 = vand.u32 %v49, 4294901760
    %v517 = vsub.f32 %v49, %v516
    %518 = vmatpush2.msra.mxu0 %v517
    %519 = vmatprep.subr.mxu0 0.0
    %v520 = vand.u32 %v48, 4294901760
    %v521 = vsub.f32 %v48, %v520
    %522 = vmatpush2.msra.mxu0 %v521
    %523 = vmatprep.subr.mxu0 0.0
    %v524 = vand.u32 %v47, 4294901760
    %v525 = vsub.f32 %v47, %v524
    %526 = vmatpush2.msra.mxu0 %v525
    %527 = vmatprep.subr.mxu0 0.0
    %v528 = vand.u32 %v46, 4294901760
    %v529 = vsub.f32 %v46, %v528
    %530 = vmatpush2.msra.mxu0 %v529
    %531 = vmatprep.subr.mxu0 0.0
    %v532 = vand.u32 %v45, 4294901760
    %v533 = vsub.f32 %v45, %v532
    %534 = vmatpush2.msra.mxu0 %v533
    %535 = vmatprep.subr.mxu0 0.0
    %v536 = vand.u32 %v44, 4294901760
    %v537 = vsub.f32 %v44, %v536
    %538 = vmatpush2.msra.mxu0 %v537
    %539 = vmatprep.subr.mxu0 0.0
    %v540 = vand.u32 %v43, 4294901760
    %v541 = vsub.f32 %v43, %v540
    %542 = vmatpush2.msra.mxu0 %v541
    %543 = vmatprep.subr.mxu0 0.0
    %v544 = vand.u32 %v42, 4294901760
    %v545 = vsub.f32 %v42, %v544
    %546 = vmatpush2.msra.mxu0 %v545
    %547 = vmatprep.subr.mxu0 0.0
    %v548 = vand.u32 %v41, 4294901760
    %v549 = vsub.f32 %v41, %v548
    %550 = vmatpush2.msra.mxu0 %v549
    %v551 = vand.u32 %v22, 4294901760
    %v552 = vsub.f32 %v22, %v551
    %553 = vmatprep.mubr.f32.mxu0 %v552
    %v554 = vand.u32 %v21, 4294901760
    %v555 = vsub.f32 %v21, %v554
    %556 = vmatmul.mubr.f32.gmra.mxu0 %v555
    %v557 = vpop.f32.mrf.mxu0
    %v558 = vadd.f32 %v413, %v557
    %v559 = vpop.f32.mrf.mxu0
    %v560 = vand.u32 %v24, 4294901760
    %v561 = vsub.f32 %v24, %v560
    %562 = vmatprep.mubr.f32.mxu0 %v561
    %v563 = vand.u32 %v23, 4294901760
    %v564 = vsub.f32 %v23, %v563
    %565 = vmatmul.mubr.f32.gmra.mxu0 %v564
    %v566 = vpop.f32.mrf.mxu0
    %v567 = vadd.f32 %v420, %v566
    %v568 = vpop.f32.mrf.mxu0
    %569 = vdwg.mxu0
    %570 = vmatprep.subr.mxu0 0.0
    %v571 = vand.u32 %v40, 4294901760
    %572 = vmatpush1.msra.mxu0 %v571
    %573 = vmatprep.subr.mxu0 0.0
    %v574 = vand.u32 %v39, 4294901760
    %575 = vmatpush1.msra.mxu0 %v574
    %576 = vmatprep.subr.mxu0 0.0
    %v577 = vand.u32 %v38, 4294901760
    %578 = vmatpush1.msra.mxu0 %v577
    %579 = vmatprep.subr.mxu0 0.0
    %v580 = vand.u32 %v37, 4294901760
    %581 = vmatpush1.msra.mxu0 %v580
    %582 = vmatprep.subr.mxu0 0.0
    %v583 = vand.u32 %v36, 4294901760
    %584 = vmatpush1.msra.mxu0 %v583
    %585 = vmatprep.subr.mxu0 0.0
    %v586 = vand.u32 %v35, 4294901760
    %587 = vmatpush1.msra.mxu0 %v586
    %588 = vmatprep.subr.mxu0 0.0
    %v589 = vand.u32 %v34, 4294901760
    %590 = vmatpush1.msra.mxu0 %v589
    %591 = vmatprep.subr.mxu0 0.0
    %v592 = vand.u32 %v33, 4294901760
    %593 = vmatpush1.msra.mxu0 %v592
    %594 = vmatprep.subr.mxu0 0.0
    %v595 = vand.u32 %v32, 4294901760
    %596 = vmatpush1.msra.mxu0 %v595
    %597 = vmatprep.subr.mxu0 0.0
    %v598 = vand.u32 %v31, 4294901760
    %599 = vmatpush1.msra.mxu0 %v598
    %600 = vmatprep.subr.mxu0 0.0
    %v601 = vand.u32 %v30, 4294901760
    %602 = vmatpush1.msra.mxu0 %v601
    %603 = vmatprep.subr.mxu0 0.0
    %v604 = vand.u32 %v29, 4294901760
    %605 = vmatpush1.msra.mxu0 %v604
    %606 = vmatprep.subr.mxu0 0.0
    %v607 = vand.u32 %v28, 4294901760
    %608 = vmatpush1.msra.mxu0 %v607
    %609 = vmatprep.subr.mxu0 0.0
    %v610 = vand.u32 %v27, 4294901760
    %611 = vmatpush1.msra.mxu0 %v610
    %612 = vmatprep.subr.mxu0 0.0
    %v613 = vand.u32 %v26, 4294901760
    %614 = vmatpush1.msra.mxu0 %v613
    %615 = vmatprep.subr.mxu0 0.0
    %v616 = vand.u32 %v25, 4294901760
    %617 = vmatpush1.msra.mxu0 %v616
    %618 = vmatprep.subr.mxu0 0.0
    %v619 = vand.u32 %v56, 4294901760
    %620 = vmatpush2.msra.mxu0 %v619
    %621 = vmatprep.subr.mxu0 0.0
    %v622 = vand.u32 %v55, 4294901760
    %623 = vmatpush2.msra.mxu0 %v622
    %624 = vmatprep.subr.mxu0 0.0
    %v625 = vand.u32 %v54, 4294901760
    %626 = vmatpush2.msra.mxu0 %v625
    %627 = vmatprep.subr.mxu0 0.0
    %v628 = vand.u32 %v53, 4294901760
    %629 = vmatpush2.msra.mxu0 %v628
    %630 = vmatprep.subr.mxu0 0.0
    %v631 = vand.u32 %v52, 4294901760
    %632 = vmatpush2.msra.mxu0 %v631
    %633 = vmatprep.subr.mxu0 0.0
    %v634 = vand.u32 %v51, 4294901760
    %635 = vmatpush2.msra.mxu0 %v634
    %636 = vmatprep.subr.mxu0 0.0
    %v637 = vand.u32 %v50, 4294901760
    %638 = vmatpush2.msra.mxu0 %v637
    %639 = vmatprep.subr.mxu0 0.0
    %v640 = vand.u32 %v49, 4294901760
    %641 = vmatpush2.msra.mxu0 %v640
    %642 = vmatprep.subr.mxu0 0.0
    %v643 = vand.u32 %v48, 4294901760
    %644 = vmatpush2.msra.mxu0 %v643
    %645 = vmatprep.subr.mxu0 0.0
    %v646 = vand.u32 %v47, 4294901760
    %647 = vmatpush2.msra.mxu0 %v646
    %648 = vmatprep.subr.mxu0 0.0
    %v649 = vand.u32 %v46, 4294901760
    %650 = vmatpush2.msra.mxu0 %v649
    %651 = vmatprep.subr.mxu0 0.0
    %v652 = vand.u32 %v45, 4294901760
    %653 = vmatpush2.msra.mxu0 %v652
    %654 = vmatprep.subr.mxu0 0.0
    %v655 = vand.u32 %v44, 4294901760
    %656 = vmatpush2.msra.mxu0 %v655
    %657 = vmatprep.subr.mxu0 0.0
    %v658 = vand.u32 %v43, 4294901760
    %659 = vmatpush2.msra.mxu0 %v658
    %660 = vmatprep.subr.mxu0 0.0
    %v661 = vand.u32 %v42, 4294901760
    %662 = vmatpush2.msra.mxu0 %v661
    %663 = vmatprep.subr.mxu0 0.0
    %v664 = vand.u32 %v41, 4294901760
    %665 = vmatpush2.msra.mxu0 %v664
    %v666 = vand.u32 %v22, 4294901760
    %v667 = vsub.f32 %v22, %v666
    %v668 = vand.u32 %v667, 4294901760
    %669 = vmatprep.mubr.f32.mxu0 %v668
    %v670 = vand.u32 %v21, 4294901760
    %v671 = vsub.f32 %v21, %v670
    %v672 = vand.u32 %v671, 4294901760
    %673 = vmatmul.mubr.f32.gmra.mxu0 %v672
    %v674 = vpop.f32.mrf.mxu0
    %v675 = vadd.f32 %v558, %v674
    %v676 = vpop.f32.mrf.mxu0
    %v677 = vand.u32 %v24, 4294901760
    %v678 = vsub.f32 %v24, %v677
    %v679 = vand.u32 %v678, 4294901760
    %680 = vmatprep.mubr.f32.mxu0 %v679
    %v681 = vand.u32 %v23, 4294901760
    %v682 = vsub.f32 %v23, %v681
    %v683 = vand.u32 %v682, 4294901760
    %684 = vmatmul.mubr.f32.gmra.mxu0 %v683
    %v685 = vpop.f32.mrf.mxu0
    %v686 = vadd.f32 %v567, %v685
    %v687 = vpop.f32.mrf.mxu0
    %688 = vdwg.mxu0
    %689 = vmatprep.subr.mxu0 0.0
    %v690 = vand.u32 %v40, 4294901760
    %v691 = vsub.f32 %v40, %v690
    %v692 = vand.u32 %v691, 4294901760
    %693 = vmatpush1.msra.mxu0 %v692
    %694 = vmatprep.subr.mxu0 0.0
    %v695 = vand.u32 %v39, 4294901760
    %v696 = vsub.f32 %v39, %v695
    %v697 = vand.u32 %v696, 4294901760
    %698 = vmatpush1.msra.mxu0 %v697
    %699 = vmatprep.subr.mxu0 0.0
    %v700 = vand.u32 %v38, 4294901760
    %v701 = vsub.f32 %v38, %v700
    %v702 = vand.u32 %v701, 4294901760
    %703 = vmatpush1.msra.mxu0 %v702
    %704 = vmatprep.subr.mxu0 0.0
    %v705 = vand.u32 %v37, 4294901760
    %v706 = vsub.f32 %v37, %v705
    %v707 = vand.u32 %v706, 4294901760
    %708 = vmatpush1.msra.mxu0 %v707
    %709 = vmatprep.subr.mxu0 0.0
    %v710 = vand.u32 %v36, 4294901760
    %v711 = vsub.f32 %v36, %v710
    %v712 = vand.u32 %v711, 4294901760
    %713 = vmatpush1.msra.mxu0 %v712
    %714 = vmatprep.subr.mxu0 0.0
    %v715 = vand.u32 %v35, 4294901760
    %v716 = vsub.f32 %v35, %v715
    %v717 = vand.u32 %v716, 4294901760
    %718 = vmatpush1.msra.mxu0 %v717
    %719 = vmatprep.subr.mxu0 0.0
    %v720 = vand.u32 %v34, 4294901760
    %v721 = vsub.f32 %v34, %v720
    %v722 = vand.u32 %v721, 4294901760
    %723 = vmatpush1.msra.mxu0 %v722
    %724 = vmatprep.subr.mxu0 0.0
    %v725 = vand.u32 %v33, 4294901760
    %v726 = vsub.f32 %v33, %v725
    %v727 = vand.u32 %v726, 4294901760
    %728 = vmatpush1.msra.mxu0 %v727
    %729 = vmatprep.subr.mxu0 0.0
    %v730 = vand.u32 %v32, 4294901760
    %v731 = vsub.f32 %v32, %v730
    %v732 = vand.u32 %v731, 4294901760
    %733 = vmatpush1.msra.mxu0 %v732
    %734 = vmatprep.subr.mxu0 0.0
    %v735 = vand.u32 %v31, 4294901760
    %v736 = vsub.f32 %v31, %v735
    %v737 = vand.u32 %v736, 4294901760
    %738 = vmatpush1.msra.mxu0 %v737
    %739 = vmatprep.subr.mxu0 0.0
    %v740 = vand.u32 %v30, 4294901760
    %v741 = vsub.f32 %v30, %v740
    %v742 = vand.u32 %v741, 4294901760
    %743 = vmatpush1.msra.mxu0 %v742
    %744 = vmatprep.subr.mxu0 0.0
    %v745 = vand.u32 %v29, 4294901760
    %v746 = vsub.f32 %v29, %v745
    %v747 = vand.u32 %v746, 4294901760
    %748 = vmatpush1.msra.mxu0 %v747
    %749 = vmatprep.subr.mxu0 0.0
    %v750 = vand.u32 %v28, 4294901760
    %v751 = vsub.f32 %v28, %v750
    %v752 = vand.u32 %v751, 4294901760
    %753 = vmatpush1.msra.mxu0 %v752
    %754 = vmatprep.subr.mxu0 0.0
    %v755 = vand.u32 %v27, 4294901760
    %v756 = vsub.f32 %v27, %v755
    %v757 = vand.u32 %v756, 4294901760
    %758 = vmatpush1.msra.mxu0 %v757
    %759 = vmatprep.subr.mxu0 0.0
    %v760 = vand.u32 %v26, 4294901760
    %v761 = vsub.f32 %v26, %v760
    %v762 = vand.u32 %v761, 4294901760
    %763 = vmatpush1.msra.mxu0 %v762
    %764 = vmatprep.subr.mxu0 0.0
    %v765 = vand.u32 %v25, 4294901760
    %v766 = vsub.f32 %v25, %v765
    %v767 = vand.u32 %v766, 4294901760
    %768 = vmatpush1.msra.mxu0 %v767
    %769 = vmatprep.subr.mxu0 0.0
    %v770 = vand.u32 %v56, 4294901760
    %v771 = vsub.f32 %v56, %v770
    %v772 = vand.u32 %v771, 4294901760
    %773 = vmatpush2.msra.mxu0 %v772
    %774 = vmatprep.subr.mxu0 0.0
    %v775 = vand.u32 %v55, 4294901760
    %v776 = vsub.f32 %v55, %v775
    %v777 = vand.u32 %v776, 4294901760
    %778 = vmatpush2.msra.mxu0 %v777
    %779 = vmatprep.subr.mxu0 0.0
    %v780 = vand.u32 %v54, 4294901760
    %v781 = vsub.f32 %v54, %v780
    %v782 = vand.u32 %v781, 4294901760
    %783 = vmatpush2.msra.mxu0 %v782
    %784 = vmatprep.subr.mxu0 0.0
    %v785 = vand.u32 %v53, 4294901760
    %v786 = vsub.f32 %v53, %v785
    %v787 = vand.u32 %v786, 4294901760
    %788 = vmatpush2.msra.mxu0 %v787
    %789 = vmatprep.subr.mxu0 0.0
    %v790 = vand.u32 %v52, 4294901760
    %v791 = vsub.f32 %v52, %v790
    %v792 = vand.u32 %v791, 4294901760
    %793 = vmatpush2.msra.mxu0 %v792
    %794 = vmatprep.subr.mxu0 0.0
    %v795 = vand.u32 %v51, 4294901760
    %v796 = vsub.f32 %v51, %v795
    %v797 = vand.u32 %v796, 4294901760
    %798 = vmatpush2.msra.mxu0 %v797
    %799 = vmatprep.subr.mxu0 0.0
    %v800 = vand.u32 %v50, 4294901760
    %v801 = vsub.f32 %v50, %v800
    %v802 = vand.u32 %v801, 4294901760
    %803 = vmatpush2.msra.mxu0 %v802
    %804 = vmatprep.subr.mxu0 0.0
    %v805 = vand.u32 %v49, 4294901760
    %v806 = vsub.f32 %v49, %v805
    %v807 = vand.u32 %v806, 4294901760
    %808 = vmatpush2.msra.mxu0 %v807
    %809 = vmatprep.subr.mxu0 0.0
    %v810 = vand.u32 %v48, 4294901760
    %v811 = vsub.f32 %v48, %v810
    %v812 = vand.u32 %v811, 4294901760
    %813 = vmatpush2.msra.mxu0 %v812
    %814 = vmatprep.subr.mxu0 0.0
    %v815 = vand.u32 %v47, 4294901760
    %v816 = vsub.f32 %v47, %v815
    %v817 = vand.u32 %v816, 4294901760
    %818 = vmatpush2.msra.mxu0 %v817
    %819 = vmatprep.subr.mxu0 0.0
    %v820 = vand.u32 %v46, 4294901760
    %v821 = vsub.f32 %v46, %v820
    %v822 = vand.u32 %v821, 4294901760
    %823 = vmatpush2.msra.mxu0 %v822
    %824 = vmatprep.subr.mxu0 0.0
    %v825 = vand.u32 %v45, 4294901760
    %v826 = vsub.f32 %v45, %v825
    %v827 = vand.u32 %v826, 4294901760
    %828 = vmatpush2.msra.mxu0 %v827
    %829 = vmatprep.subr.mxu0 0.0
    %v830 = vand.u32 %v44, 4294901760
    %v831 = vsub.f32 %v44, %v830
    %v832 = vand.u32 %v831, 4294901760
    %833 = vmatpush2.msra.mxu0 %v832
    %834 = vmatprep.subr.mxu0 0.0
    %v835 = vand.u32 %v43, 4294901760
    %v836 = vsub.f32 %v43, %v835
    %v837 = vand.u32 %v836, 4294901760
    %838 = vmatpush2.msra.mxu0 %v837
    %839 = vmatprep.subr.mxu0 0.0
    %v840 = vand.u32 %v42, 4294901760
    %v841 = vsub.f32 %v42, %v840
    %v842 = vand.u32 %v841, 4294901760
    %843 = vmatpush2.msra.mxu0 %v842
    %844 = vmatprep.subr.mxu0 0.0
    %v845 = vand.u32 %v41, 4294901760
    %v846 = vsub.f32 %v41, %v845
    %v847 = vand.u32 %v846, 4294901760
    %848 = vmatpush2.msra.mxu0 %v847
    %v849 = vand.u32 %v22, 4294901760
    %850 = vmatprep.mubr.f32.mxu0 %v849
    %v851 = vand.u32 %v21, 4294901760
    %852 = vmatmul.mubr.f32.gmra.mxu0 %v851
    %v853 = vpop.f32.mrf.mxu0
    %v854 = vadd.f32 %v675, %v853
    %v855 = vpop.f32.mrf.mxu0
    %v856 = vand.u32 %v24, 4294901760
    %857 = vmatprep.mubr.f32.mxu0 %v856
    %v858 = vand.u32 %v23, 4294901760
    %859 = vmatmul.mubr.f32.gmra.mxu0 %v858
    %v860 = vpop.f32.mrf.mxu0
    %v861 = vadd.f32 %v686, %v860
    %v862 = vpop.f32.mrf.mxu0
    %863 = vdwg.mxu0
    %864 = vmatprep.subr.mxu0 0.0
    %v865 = vand.u32 %v40, 4294901760
    %866 = vmatpush1.msra.mxu0 %v865
    %867 = vmatprep.subr.mxu0 0.0
    %v868 = vand.u32 %v39, 4294901760
    %869 = vmatpush1.msra.mxu0 %v868
    %870 = vmatprep.subr.mxu0 0.0
    %v871 = vand.u32 %v38, 4294901760
    %872 = vmatpush1.msra.mxu0 %v871
    %873 = vmatprep.subr.mxu0 0.0
    %v874 = vand.u32 %v37, 4294901760
    %875 = vmatpush1.msra.mxu0 %v874
    %876 = vmatprep.subr.mxu0 0.0
    %v877 = vand.u32 %v36, 4294901760
    %878 = vmatpush1.msra.mxu0 %v877
    %879 = vmatprep.subr.mxu0 0.0
    %v880 = vand.u32 %v35, 4294901760
    %881 = vmatpush1.msra.mxu0 %v880
    %882 = vmatprep.subr.mxu0 0.0
    %v883 = vand.u32 %v34, 4294901760
    %884 = vmatpush1.msra.mxu0 %v883
    %885 = vmatprep.subr.mxu0 0.0
    %v886 = vand.u32 %v33, 4294901760
    %887 = vmatpush1.msra.mxu0 %v886
    %888 = vmatprep.subr.mxu0 0.0
    %v889 = vand.u32 %v32, 4294901760
    %890 = vmatpush1.msra.mxu0 %v889
    %891 = vmatprep.subr.mxu0 0.0
    %v892 = vand.u32 %v31, 4294901760
    %893 = vmatpush1.msra.mxu0 %v892
    %894 = vmatprep.subr.mxu0 0.0
    %v895 = vand.u32 %v30, 4294901760
    %896 = vmatpush1.msra.mxu0 %v895
    %897 = vmatprep.subr.mxu0 0.0
    %v898 = vand.u32 %v29, 4294901760
    %899 = vmatpush1.msra.mxu0 %v898
    %900 = vmatprep.subr.mxu0 0.0
    %v901 = vand.u32 %v28, 4294901760
    %902 = vmatpush1.msra.mxu0 %v901
    %903 = vmatprep.subr.mxu0 0.0
    %v904 = vand.u32 %v27, 4294901760
    %905 = vmatpush1.msra.mxu0 %v904
    %906 = vmatprep.subr.mxu0 0.0
    %v907 = vand.u32 %v26, 4294901760
    %908 = vmatpush1.msra.mxu0 %v907
    %909 = vmatprep.subr.mxu0 0.0
    %v910 = vand.u32 %v25, 4294901760
    %911 = vmatpush1.msra.mxu0 %v910
    %912 = vmatprep.subr.mxu0 0.0
    %v913 = vand.u32 %v56, 4294901760
    %914 = vmatpush2.msra.mxu0 %v913
    %915 = vmatprep.subr.mxu0 0.0
    %v916 = vand.u32 %v55, 4294901760
    %917 = vmatpush2.msra.mxu0 %v916
    %918 = vmatprep.subr.mxu0 0.0
    %v919 = vand.u32 %v54, 4294901760
    %920 = vmatpush2.msra.mxu0 %v919
    %921 = vmatprep.subr.mxu0 0.0
    %v922 = vand.u32 %v53, 4294901760
    %923 = vmatpush2.msra.mxu0 %v922
    %924 = vmatprep.subr.mxu0 0.0
    %v925 = vand.u32 %v52, 4294901760
    %926 = vmatpush2.msra.mxu0 %v925
    %927 = vmatprep.subr.mxu0 0.0
    %v928 = vand.u32 %v51, 4294901760
    %929 = vmatpush2.msra.mxu0 %v928
    %930 = vmatprep.subr.mxu0 0.0
    %v931 = vand.u32 %v50, 4294901760
    %932 = vmatpush2.msra.mxu0 %v931
    %933 = vmatprep.subr.mxu0 0.0
    %v934 = vand.u32 %v49, 4294901760
    %935 = vmatpush2.msra.mxu0 %v934
    %936 = vmatprep.subr.mxu0 0.0
    %v937 = vand.u32 %v48, 4294901760
    %938 = vmatpush2.msra.mxu0 %v937
    %939 = vmatprep.subr.mxu0 0.0
    %v940 = vand.u32 %v47, 4294901760
    %941 = vmatpush2.msra.mxu0 %v940
    %942 = vmatprep.subr.mxu0 0.0
    %v943 = vand.u32 %v46, 4294901760
    %944 = vmatpush2.msra.mxu0 %v943
    %945 = vmatprep.subr.mxu0 0.0
    %v946 = vand.u32 %v45, 4294901760
    %947 = vmatpush2.msra.mxu0 %v946
    %948 = vmatprep.subr.mxu0 0.0
    %v949 = vand.u32 %v44, 4294901760
    %950 = vmatpush2.msra.mxu0 %v949
    %951 = vmatprep.subr.mxu0 0.0
    %v952 = vand.u32 %v43, 4294901760
    %953 = vmatpush2.msra.mxu0 %v952
    %954 = vmatprep.subr.mxu0 0.0
    %v955 = vand.u32 %v42, 4294901760
    %956 = vmatpush2.msra.mxu0 %v955
    %957 = vmatprep.subr.mxu0 0.0
    %v958 = vand.u32 %v41, 4294901760
    %959 = vmatpush2.msra.mxu0 %v958
    %v960 = vand.u32 %v22, 4294901760
    %961 = vmatprep.mubr.f32.mxu0 %v960
    %v962 = vand.u32 %v21, 4294901760
    %963 = vmatmul.mubr.f32.gmra.mxu0 %v962
    %v964 = vpop.f32.mrf.mxu0
    %v965 = vadd.f32 %v854, %v964
    %v966 = vpop.f32.mrf.mxu0
    %v967 = vand.u32 %v24, 4294901760
    %968 = vmatprep.mubr.f32.mxu0 %v967
    %v969 = vand.u32 %v23, 4294901760
    %970 = vmatmul.mubr.f32.gmra.mxu0 %v969
    %v971 = vpop.f32.mrf.mxu0
    %v972 = vadd.f32 %v861, %v971
    %v973 = vpop.f32.mrf.mxu0
    %974 = vdwg.mxu0
    %v975 = vmul.f32 %v965, 0.03125
    %v976 = vmul.f32 %v972, 0.03125
    %v977 = vld [vmem:[%s3] sm:$0xff]
    %vm978 = vcmask 64512
    %v980 = vsel %vm978, %v975, 0
    %v983 = vsel %vm978, %v976, 0
    %985 = vmatprep.subr.mxu0 0.0
    %986 = vmatpush1.msra.mxu0 0.0
    %987 = vmatprep.subr.mxu0 0.0
    %988 = vmatpush1.msra.mxu0 0.0
    %989 = vmatprep.subr.mxu0 0.0
    %990 = vmatpush1.msra.mxu0 0.0
    %991 = vmatprep.subr.mxu0 0.0
    %992 = vmatpush1.msra.mxu0 0.0
    %993 = vmatprep.subr.mxu0 0.0
    %994 = vmatpush1.msra.mxu0 0.0
    %995 = vmatprep.subr.mxu0 0.0
    %996 = vmatpush1.msra.mxu0 0.0
    %997 = vmatprep.subr.mxu0 0.0
    %998 = vmatpush1.msra.mxu0 0.0
    %999 = vmatprep.subr.mxu0 0.0
    %1000 = vmatpush1.msra.mxu0 0.0
    %1001 = vmatprep.subr.mxu0 0.0
    %1002 = vmatpush1.msra.mxu0 0.0
    %1003 = vmatprep.subr.mxu0 0.0
    %1004 = vmatpush1.msra.mxu0 0.0
    %1005 = vmatprep.subr.mxu0 0.0
    %1006 = vmatpush1.msra.mxu0 0.0
    %1007 = vmatprep.subr.mxu0 0.0
    %1008 = vmatpush1.msra.mxu0 0.0
    %1009 = vmatprep.subr.mxu0 0.0
    %1010 = vmatpush1.msra.mxu0 0.0
    %1011 = vmatprep.subr.mxu0 0.0
    %1012 = vmatpush1.msra.mxu0 0.0
    %1013 = vmatprep.subr.mxu0 0.0
    %1014 = vmatpush1.msra.mxu0 0.0
    %1015 = vmatprep.subr.mxu0 0.0
    %v1016 = vand.u32 %v977, 4294901760
    %1017 = vmatpush1.msra.mxu0 %v1016
    %1018 = vmatprep.subr.mxu0 0.0
    %1019 = vmatpush2.msra.mxu0 0.0
    %1020 = vmatprep.subr.mxu0 0.0
    %1021 = vmatpush2.msra.mxu0 0.0
    %1022 = vmatprep.subr.mxu0 0.0
    %1023 = vmatpush2.msra.mxu0 0.0
    %1024 = vmatprep.subr.mxu0 0.0
    %1025 = vmatpush2.msra.mxu0 0.0
    %1026 = vmatprep.subr.mxu0 0.0
    %1027 = vmatpush2.msra.mxu0 0.0
    %1028 = vmatprep.subr.mxu0 0.0
    %1029 = vmatpush2.msra.mxu0 0.0
    %1030 = vmatprep.subr.mxu0 0.0
    %1031 = vmatpush2.msra.mxu0 0.0
    %1032 = vmatprep.subr.mxu0 0.0
    %1033 = vmatpush2.msra.mxu0 0.0
    %1034 = vmatprep.subr.mxu0 0.0
    %1035 = vmatpush2.msra.mxu0 0.0
    %1036 = vmatprep.subr.mxu0 0.0
    %1037 = vmatpush2.msra.mxu0 0.0
    %1038 = vmatprep.subr.mxu0 0.0
    %1039 = vmatpush2.msra.mxu0 0.0
    %1040 = vmatprep.subr.mxu0 0.0
    %1041 = vmatpush2.msra.mxu0 0.0
    %1042 = vmatprep.subr.mxu0 0.0
    %1043 = vmatpush2.msra.mxu0 0.0
    %1044 = vmatprep.subr.mxu0 0.0
    %1045 = vmatpush2.msra.mxu0 0.0
    %1046 = vmatprep.subr.mxu0 0.0
    %1047 = vmatpush2.msra.mxu0 0.0
    %1048 = vmatprep.subr.mxu0 0.0
    %1049 = vmatpush2.msra.mxu0 0.0
    %1050 = vmatprep.mubr.f32.mxu0 0.0
    %v1051 = vand.u32 %v980, 4294901760
    %v1052 = vsub.f32 %v980, %v1051
    %v1053 = vand.u32 %v1052, 4294901760
    %v1054 = vsub.f32 %v1052, %v1053
    %v1055 = vand.u32 %v1054, 4294901760
    %1056 = vmatmul.mubr.f32.gmra.mxu0 %v1055
    %v1057 = vpop.f32.mrf.mxu0
    %v1058 = vadd.f32 0.0, %v1057
    %v1059 = vpop.f32.mrf.mxu0
    %1060 = vmatprep.mubr.f32.mxu0 0.0
    %v1061 = vand.u32 %v983, 4294901760
    %v1062 = vsub.f32 %v983, %v1061
    %v1063 = vand.u32 %v1062, 4294901760
    %v1064 = vsub.f32 %v1062, %v1063
    %v1065 = vand.u32 %v1064, 4294901760
    %1066 = vmatmul.mubr.f32.gmra.mxu0 %v1065
    %v1067 = vpop.f32.mrf.mxu0
    %v1068 = vadd.f32 0.0, %v1067
    %v1069 = vpop.f32.mrf.mxu0
    %1070 = vdwg.mxu0
    %1071 = vmatprep.subr.mxu0 0.0
    %1072 = vmatpush1.msra.mxu0 0.0
    %1073 = vmatprep.subr.mxu0 0.0
    %1074 = vmatpush1.msra.mxu0 0.0
    %1075 = vmatprep.subr.mxu0 0.0
    %1076 = vmatpush1.msra.mxu0 0.0
    %1077 = vmatprep.subr.mxu0 0.0
    %1078 = vmatpush1.msra.mxu0 0.0
    %1079 = vmatprep.subr.mxu0 0.0
    %1080 = vmatpush1.msra.mxu0 0.0
    %1081 = vmatprep.subr.mxu0 0.0
    %1082 = vmatpush1.msra.mxu0 0.0
    %1083 = vmatprep.subr.mxu0 0.0
    %1084 = vmatpush1.msra.mxu0 0.0
    %1085 = vmatprep.subr.mxu0 0.0
    %1086 = vmatpush1.msra.mxu0 0.0
    %1087 = vmatprep.subr.mxu0 0.0
    %1088 = vmatpush1.msra.mxu0 0.0
    %1089 = vmatprep.subr.mxu0 0.0
    %1090 = vmatpush1.msra.mxu0 0.0
    %1091 = vmatprep.subr.mxu0 0.0
    %1092 = vmatpush1.msra.mxu0 0.0
    %1093 = vmatprep.subr.mxu0 0.0
    %1094 = vmatpush1.msra.mxu0 0.0
    %1095 = vmatprep.subr.mxu0 0.0
    %1096 = vmatpush1.msra.mxu0 0.0
    %1097 = vmatprep.subr.mxu0 0.0
    %1098 = vmatpush1.msra.mxu0 0.0
    %1099 = vmatprep.subr.mxu0 0.0
    %1100 = vmatpush1.msra.mxu0 0.0
    %1101 = vmatprep.subr.mxu0 0.0
    %v1102 = vand.u32 %v977, 4294901760
    %v1103 = vsub.f32 %v977, %v1102
    %v1104 = vand.u32 %v1103, 4294901760
    %v1105 = vsub.f32 %v1103, %v1104
    %v1106 = vand.u32 %v1105, 4294901760
    %1107 = vmatpush1.msra.mxu0 %v1106
    %1108 = vmatprep.subr.mxu0 0.0
    %1109 = vmatpush2.msra.mxu0 0.0
    %1110 = vmatprep.subr.mxu0 0.0
    %1111 = vmatpush2.msra.mxu0 0.0
    %1112 = vmatprep.subr.mxu0 0.0
    %1113 = vmatpush2.msra.mxu0 0.0
    %1114 = vmatprep.subr.mxu0 0.0
    %1115 = vmatpush2.msra.mxu0 0.0
    %1116 = vmatprep.subr.mxu0 0.0
    %1117 = vmatpush2.msra.mxu0 0.0
    %1118 = vmatprep.subr.mxu0 0.0
    %1119 = vmatpush2.msra.mxu0 0.0
    %1120 = vmatprep.subr.mxu0 0.0
    %1121 = vmatpush2.msra.mxu0 0.0
    %1122 = vmatprep.subr.mxu0 0.0
    %1123 = vmatpush2.msra.mxu0 0.0
    %1124 = vmatprep.subr.mxu0 0.0
    %1125 = vmatpush2.msra.mxu0 0.0
    %1126 = vmatprep.subr.mxu0 0.0
    %1127 = vmatpush2.msra.mxu0 0.0
    %1128 = vmatprep.subr.mxu0 0.0
    %1129 = vmatpush2.msra.mxu0 0.0
    %1130 = vmatprep.subr.mxu0 0.0
    %1131 = vmatpush2.msra.mxu0 0.0
    %1132 = vmatprep.subr.mxu0 0.0
    %1133 = vmatpush2.msra.mxu0 0.0
    %1134 = vmatprep.subr.mxu0 0.0
    %1135 = vmatpush2.msra.mxu0 0.0
    %1136 = vmatprep.subr.mxu0 0.0
    %1137 = vmatpush2.msra.mxu0 0.0
    %1138 = vmatprep.subr.mxu0 0.0
    %1139 = vmatpush2.msra.mxu0 0.0
    %1140 = vmatprep.mubr.f32.mxu0 0.0
    %v1141 = vand.u32 %v980, 4294901760
    %1142 = vmatmul.mubr.f32.gmra.mxu0 %v1141
    %v1143 = vpop.f32.mrf.mxu0
    %v1144 = vadd.f32 %v1058, %v1143
    %v1145 = vpop.f32.mrf.mxu0
    %1146 = vmatprep.mubr.f32.mxu0 0.0
    %v1147 = vand.u32 %v983, 4294901760
    %1148 = vmatmul.mubr.f32.gmra.mxu0 %v1147
    %v1149 = vpop.f32.mrf.mxu0
    %v1150 = vadd.f32 %v1068, %v1149
    %v1151 = vpop.f32.mrf.mxu0
    %1152 = vdwg.mxu0
    %1153 = vmatprep.subr.mxu0 0.0
    %1154 = vmatpush1.msra.mxu0 0.0
    %1155 = vmatprep.subr.mxu0 0.0
    %1156 = vmatpush1.msra.mxu0 0.0
    %1157 = vmatprep.subr.mxu0 0.0
    %1158 = vmatpush1.msra.mxu0 0.0
    %1159 = vmatprep.subr.mxu0 0.0
    %1160 = vmatpush1.msra.mxu0 0.0
    %1161 = vmatprep.subr.mxu0 0.0
    %1162 = vmatpush1.msra.mxu0 0.0
    %1163 = vmatprep.subr.mxu0 0.0
    %1164 = vmatpush1.msra.mxu0 0.0
    %1165 = vmatprep.subr.mxu0 0.0
    %1166 = vmatpush1.msra.mxu0 0.0
    %1167 = vmatprep.subr.mxu0 0.0
    %1168 = vmatpush1.msra.mxu0 0.0
    %1169 = vmatprep.subr.mxu0 0.0
    %1170 = vmatpush1.msra.mxu0 0.0
    %1171 = vmatprep.subr.mxu0 0.0
    %1172 = vmatpush1.msra.mxu0 0.0
    %1173 = vmatprep.subr.mxu0 0.0
    %1174 = vmatpush1.msra.mxu0 0.0
    %1175 = vmatprep.subr.mxu0 0.0
    %1176 = vmatpush1.msra.mxu0 0.0
    %1177 = vmatprep.subr.mxu0 0.0
    %1178 = vmatpush1.msra.mxu0 0.0
    %1179 = vmatprep.subr.mxu0 0.0
    %1180 = vmatpush1.msra.mxu0 0.0
    %1181 = vmatprep.subr.mxu0 0.0
    %1182 = vmatpush1.msra.mxu0 0.0
    %1183 = vmatprep.subr.mxu0 0.0
    %v1184 = vand.u32 %v977, 4294901760
    %v1185 = vsub.f32 %v977, %v1184
    %1186 = vmatpush1.msra.mxu0 %v1185
    %1187 = vmatprep.subr.mxu0 0.0
    %1188 = vmatpush2.msra.mxu0 0.0
    %1189 = vmatprep.subr.mxu0 0.0
    %1190 = vmatpush2.msra.mxu0 0.0
    %1191 = vmatprep.subr.mxu0 0.0
    %1192 = vmatpush2.msra.mxu0 0.0
    %1193 = vmatprep.subr.mxu0 0.0
    %1194 = vmatpush2.msra.mxu0 0.0
    %1195 = vmatprep.subr.mxu0 0.0
    %1196 = vmatpush2.msra.mxu0 0.0
    %1197 = vmatprep.subr.mxu0 0.0
    %1198 = vmatpush2.msra.mxu0 0.0
    %1199 = vmatprep.subr.mxu0 0.0
    %1200 = vmatpush2.msra.mxu0 0.0
    %1201 = vmatprep.subr.mxu0 0.0
    %1202 = vmatpush2.msra.mxu0 0.0
    %1203 = vmatprep.subr.mxu0 0.0
    %1204 = vmatpush2.msra.mxu0 0.0
    %1205 = vmatprep.subr.mxu0 0.0
    %1206 = vmatpush2.msra.mxu0 0.0
    %1207 = vmatprep.subr.mxu0 0.0
    %1208 = vmatpush2.msra.mxu0 0.0
    %1209 = vmatprep.subr.mxu0 0.0
    %1210 = vmatpush2.msra.mxu0 0.0
    %1211 = vmatprep.subr.mxu0 0.0
    %1212 = vmatpush2.msra.mxu0 0.0
    %1213 = vmatprep.subr.mxu0 0.0
    %1214 = vmatpush2.msra.mxu0 0.0
    %1215 = vmatprep.subr.mxu0 0.0
    %1216 = vmatpush2.msra.mxu0 0.0
    %1217 = vmatprep.subr.mxu0 0.0
    %1218 = vmatpush2.msra.mxu0 0.0
    %1219 = vmatprep.mubr.f32.mxu0 0.0
    %v1220 = vand.u32 %v980, 4294901760
    %v1221 = vsub.f32 %v980, %v1220
    %1222 = vmatmul.mubr.f32.gmra.mxu0 %v1221
    %v1223 = vpop.f32.mrf.mxu0
    %v1224 = vadd.f32 %v1144, %v1223
    %v1225 = vpop.f32.mrf.mxu0
    %1226 = vmatprep.mubr.f32.mxu0 0.0
    %v1227 = vand.u32 %v983, 4294901760
    %v1228 = vsub.f32 %v983, %v1227
    %1229 = vmatmul.mubr.f32.gmra.mxu0 %v1228
    %v1230 = vpop.f32.mrf.mxu0
    %v1231 = vadd.f32 %v1150, %v1230
    %v1232 = vpop.f32.mrf.mxu0
    %1233 = vdwg.mxu0
    %1234 = vmatprep.subr.mxu0 0.0
    %1235 = vmatpush1.msra.mxu0 0.0
    %1236 = vmatprep.subr.mxu0 0.0
    %1237 = vmatpush1.msra.mxu0 0.0
    %1238 = vmatprep.subr.mxu0 0.0
    %1239 = vmatpush1.msra.mxu0 0.0
    %1240 = vmatprep.subr.mxu0 0.0
    %1241 = vmatpush1.msra.mxu0 0.0
    %1242 = vmatprep.subr.mxu0 0.0
    %1243 = vmatpush1.msra.mxu0 0.0
    %1244 = vmatprep.subr.mxu0 0.0
    %1245 = vmatpush1.msra.mxu0 0.0
    %1246 = vmatprep.subr.mxu0 0.0
    %1247 = vmatpush1.msra.mxu0 0.0
    %1248 = vmatprep.subr.mxu0 0.0
    %1249 = vmatpush1.msra.mxu0 0.0
    %1250 = vmatprep.subr.mxu0 0.0
    %1251 = vmatpush1.msra.mxu0 0.0
    %1252 = vmatprep.subr.mxu0 0.0
    %1253 = vmatpush1.msra.mxu0 0.0
    %1254 = vmatprep.subr.mxu0 0.0
    %1255 = vmatpush1.msra.mxu0 0.0
    %1256 = vmatprep.subr.mxu0 0.0
    %1257 = vmatpush1.msra.mxu0 0.0
    %1258 = vmatprep.subr.mxu0 0.0
    %1259 = vmatpush1.msra.mxu0 0.0
    %1260 = vmatprep.subr.mxu0 0.0
    %1261 = vmatpush1.msra.mxu0 0.0
    %1262 = vmatprep.subr.mxu0 0.0
    %1263 = vmatpush1.msra.mxu0 0.0
    %1264 = vmatprep.subr.mxu0 0.0
    %v1265 = vand.u32 %v977, 4294901760
    %1266 = vmatpush1.msra.mxu0 %v1265
    %1267 = vmatprep.subr.mxu0 0.0
    %1268 = vmatpush2.msra.mxu0 0.0
    %1269 = vmatprep.subr.mxu0 0.0
    %1270 = vmatpush2.msra.mxu0 0.0
    %1271 = vmatprep.subr.mxu0 0.0
    %1272 = vmatpush2.msra.mxu0 0.0
    %1273 = vmatprep.subr.mxu0 0.0
    %1274 = vmatpush2.msra.mxu0 0.0
    %1275 = vmatprep.subr.mxu0 0.0
    %1276 = vmatpush2.msra.mxu0 0.0
    %1277 = vmatprep.subr.mxu0 0.0
    %1278 = vmatpush2.msra.mxu0 0.0
    %1279 = vmatprep.subr.mxu0 0.0
    %1280 = vmatpush2.msra.mxu0 0.0
    %1281 = vmatprep.subr.mxu0 0.0
    %1282 = vmatpush2.msra.mxu0 0.0
    %1283 = vmatprep.subr.mxu0 0.0
    %1284 = vmatpush2.msra.mxu0 0.0
    %1285 = vmatprep.subr.mxu0 0.0
    %1286 = vmatpush2.msra.mxu0 0.0
    %1287 = vmatprep.subr.mxu0 0.0
    %1288 = vmatpush2.msra.mxu0 0.0
    %1289 = vmatprep.subr.mxu0 0.0
    %1290 = vmatpush2.msra.mxu0 0.0
    %1291 = vmatprep.subr.mxu0 0.0
    %1292 = vmatpush2.msra.mxu0 0.0
    %1293 = vmatprep.subr.mxu0 0.0
    %1294 = vmatpush2.msra.mxu0 0.0
    %1295 = vmatprep.subr.mxu0 0.0
    %1296 = vmatpush2.msra.mxu0 0.0
    %1297 = vmatprep.subr.mxu0 0.0
    %1298 = vmatpush2.msra.mxu0 0.0
    %1299 = vmatprep.mubr.f32.mxu0 0.0
    %v1300 = vand.u32 %v980, 4294901760
    %v1301 = vsub.f32 %v980, %v1300
    %v1302 = vand.u32 %v1301, 4294901760
    %1303 = vmatmul.mubr.f32.gmra.mxu0 %v1302
    %v1304 = vpop.f32.mrf.mxu0
    %v1305 = vadd.f32 %v1224, %v1304
    %v1306 = vpop.f32.mrf.mxu0
    %1307 = vmatprep.mubr.f32.mxu0 0.0
    %v1308 = vand.u32 %v983, 4294901760
    %v1309 = vsub.f32 %v983, %v1308
    %v1310 = vand.u32 %v1309, 4294901760
    %1311 = vmatmul.mubr.f32.gmra.mxu0 %v1310
    %v1312 = vpop.f32.mrf.mxu0
    %v1313 = vadd.f32 %v1231, %v1312
    %v1314 = vpop.f32.mrf.mxu0
    %1315 = vdwg.mxu0
    %1316 = vmatprep.subr.mxu0 0.0
    %1317 = vmatpush1.msra.mxu0 0.0
    %1318 = vmatprep.subr.mxu0 0.0
    %1319 = vmatpush1.msra.mxu0 0.0
    %1320 = vmatprep.subr.mxu0 0.0
    %1321 = vmatpush1.msra.mxu0 0.0
    %1322 = vmatprep.subr.mxu0 0.0
    %1323 = vmatpush1.msra.mxu0 0.0
    %1324 = vmatprep.subr.mxu0 0.0
    %1325 = vmatpush1.msra.mxu0 0.0
    %1326 = vmatprep.subr.mxu0 0.0
    %1327 = vmatpush1.msra.mxu0 0.0
    %1328 = vmatprep.subr.mxu0 0.0
    %1329 = vmatpush1.msra.mxu0 0.0
    %1330 = vmatprep.subr.mxu0 0.0
    %1331 = vmatpush1.msra.mxu0 0.0
    %1332 = vmatprep.subr.mxu0 0.0
    %1333 = vmatpush1.msra.mxu0 0.0
    %1334 = vmatprep.subr.mxu0 0.0
    %1335 = vmatpush1.msra.mxu0 0.0
    %1336 = vmatprep.subr.mxu0 0.0
    %1337 = vmatpush1.msra.mxu0 0.0
    %1338 = vmatprep.subr.mxu0 0.0
    %1339 = vmatpush1.msra.mxu0 0.0
    %1340 = vmatprep.subr.mxu0 0.0
    %1341 = vmatpush1.msra.mxu0 0.0
    %1342 = vmatprep.subr.mxu0 0.0
    %1343 = vmatpush1.msra.mxu0 0.0
    %1344 = vmatprep.subr.mxu0 0.0
    %1345 = vmatpush1.msra.mxu0 0.0
    %1346 = vmatprep.subr.mxu0 0.0
    %v1347 = vand.u32 %v977, 4294901760
    %v1348 = vsub.f32 %v977, %v1347
    %v1349 = vand.u32 %v1348, 4294901760
    %1350 = vmatpush1.msra.mxu0 %v1349
    %1351 = vmatprep.subr.mxu0 0.0
    %1352 = vmatpush2.msra.mxu0 0.0
    %1353 = vmatprep.subr.mxu0 0.0
    %1354 = vmatpush2.msra.mxu0 0.0
    %1355 = vmatprep.subr.mxu0 0.0
    %1356 = vmatpush2.msra.mxu0 0.0
    %1357 = vmatprep.subr.mxu0 0.0
    %1358 = vmatpush2.msra.mxu0 0.0
    %1359 = vmatprep.subr.mxu0 0.0
    %1360 = vmatpush2.msra.mxu0 0.0
    %1361 = vmatprep.subr.mxu0 0.0
    %1362 = vmatpush2.msra.mxu0 0.0
    %1363 = vmatprep.subr.mxu0 0.0
    %1364 = vmatpush2.msra.mxu0 0.0
    %1365 = vmatprep.subr.mxu0 0.0
    %1366 = vmatpush2.msra.mxu0 0.0
    %1367 = vmatprep.subr.mxu0 0.0
    %1368 = vmatpush2.msra.mxu0 0.0
    %1369 = vmatprep.subr.mxu0 0.0
    %1370 = vmatpush2.msra.mxu0 0.0
    %1371 = vmatprep.subr.mxu0 0.0
    %1372 = vmatpush2.msra.mxu0 0.0
    %1373 = vmatprep.subr.mxu0 0.0
    %1374 = vmatpush2.msra.mxu0 0.0
    %1375 = vmatprep.subr.mxu0 0.0
    %1376 = vmatpush2.msra.mxu0 0.0
    %1377 = vmatprep.subr.mxu0 0.0
    %1378 = vmatpush2.msra.mxu0 0.0
    %1379 = vmatprep.subr.mxu0 0.0
    %1380 = vmatpush2.msra.mxu0 0.0
    %1381 = vmatprep.subr.mxu0 0.0
    %1382 = vmatpush2.msra.mxu0 0.0
    %1383 = vmatprep.mubr.f32.mxu0 0.0
    %v1384 = vand.u32 %v980, 4294901760
    %1385 = vmatmul.mubr.f32.gmra.mxu0 %v1384
    %v1386 = vpop.f32.mrf.mxu0
    %v1387 = vadd.f32 %v1305, %v1386
    %v1388 = vpop.f32.mrf.mxu0
    %1389 = vmatprep.mubr.f32.mxu0 0.0
    %v1390 = vand.u32 %v983, 4294901760
    %1391 = vmatmul.mubr.f32.gmra.mxu0 %v1390
    %v1392 = vpop.f32.mrf.mxu0
    %v1393 = vadd.f32 %v1313, %v1392
    %v1394 = vpop.f32.mrf.mxu0
    %1395 = vdwg.mxu0
    %1396 = vmatprep.subr.mxu0 0.0
    %1397 = vmatpush1.msra.mxu0 0.0
    %1398 = vmatprep.subr.mxu0 0.0
    %1399 = vmatpush1.msra.mxu0 0.0
    %1400 = vmatprep.subr.mxu0 0.0
    %1401 = vmatpush1.msra.mxu0 0.0
    %1402 = vmatprep.subr.mxu0 0.0
    %1403 = vmatpush1.msra.mxu0 0.0
    %1404 = vmatprep.subr.mxu0 0.0
    %1405 = vmatpush1.msra.mxu0 0.0
    %1406 = vmatprep.subr.mxu0 0.0
    %1407 = vmatpush1.msra.mxu0 0.0
    %1408 = vmatprep.subr.mxu0 0.0
    %1409 = vmatpush1.msra.mxu0 0.0
    %1410 = vmatprep.subr.mxu0 0.0
    %1411 = vmatpush1.msra.mxu0 0.0
    %1412 = vmatprep.subr.mxu0 0.0
    %1413 = vmatpush1.msra.mxu0 0.0
    %1414 = vmatprep.subr.mxu0 0.0
    %1415 = vmatpush1.msra.mxu0 0.0
    %1416 = vmatprep.subr.mxu0 0.0
    %1417 = vmatpush1.msra.mxu0 0.0
    %1418 = vmatprep.subr.mxu0 0.0
    %1419 = vmatpush1.msra.mxu0 0.0
    %1420 = vmatprep.subr.mxu0 0.0
    %1421 = vmatpush1.msra.mxu0 0.0
    %1422 = vmatprep.subr.mxu0 0.0
    %1423 = vmatpush1.msra.mxu0 0.0
    %1424 = vmatprep.subr.mxu0 0.0
    %1425 = vmatpush1.msra.mxu0 0.0
    %1426 = vmatprep.subr.mxu0 0.0
    %v1427 = vand.u32 %v977, 4294901760
    %1428 = vmatpush1.msra.mxu0 %v1427
    %1429 = vmatprep.subr.mxu0 0.0
    %1430 = vmatpush2.msra.mxu0 0.0
    %1431 = vmatprep.subr.mxu0 0.0
    %1432 = vmatpush2.msra.mxu0 0.0
    %1433 = vmatprep.subr.mxu0 0.0
    %1434 = vmatpush2.msra.mxu0 0.0
    %1435 = vmatprep.subr.mxu0 0.0
    %1436 = vmatpush2.msra.mxu0 0.0
    %1437 = vmatprep.subr.mxu0 0.0
    %1438 = vmatpush2.msra.mxu0 0.0
    %1439 = vmatprep.subr.mxu0 0.0
    %1440 = vmatpush2.msra.mxu0 0.0
    %1441 = vmatprep.subr.mxu0 0.0
    %1442 = vmatpush2.msra.mxu0 0.0
    %1443 = vmatprep.subr.mxu0 0.0
    %1444 = vmatpush2.msra.mxu0 0.0
    %1445 = vmatprep.subr.mxu0 0.0
    %1446 = vmatpush2.msra.mxu0 0.0
    %1447 = vmatprep.subr.mxu0 0.0
    %1448 = vmatpush2.msra.mxu0 0.0
    %1449 = vmatprep.subr.mxu0 0.0
    %1450 = vmatpush2.msra.mxu0 0.0
    %1451 = vmatprep.subr.mxu0 0.0
    %1452 = vmatpush2.msra.mxu0 0.0
    %1453 = vmatprep.subr.mxu0 0.0
    %1454 = vmatpush2.msra.mxu0 0.0
    %1455 = vmatprep.subr.mxu0 0.0
    %1456 = vmatpush2.msra.mxu0 0.0
    %1457 = vmatprep.subr.mxu0 0.0
    %1458 = vmatpush2.msra.mxu0 0.0
    %1459 = vmatprep.subr.mxu0 0.0
    %1460 = vmatpush2.msra.mxu0 0.0
    %1461 = vmatprep.mubr.f32.mxu0 0.0
    %v1462 = vand.u32 %v980, 4294901760
    %1463 = vmatmul.mubr.f32.gmra.mxu0 %v1462
    %v1464 = vpop.f32.mrf.mxu0
    %v1465 = vadd.f32 %v1387, %v1464
    %v1466 = vpop.f32.mrf.mxu0
    %1467 = vmatprep.mubr.f32.mxu0 0.0
    %v1468 = vand.u32 %v983, 4294901760
    %1469 = vmatmul.mubr.f32.gmra.mxu0 %v1468
    %v1470 = vpop.f32.mrf.mxu0
    %v1471 = vadd.f32 %v1393, %v1470
    %v1472 = vpop.f32.mrf.mxu0
    %1473 = vdwg.mxu0
    %v1474 = vmax.f32 %v1465, 0.0
    %v1475 = vmax.f32 %v1471, 0.0
    %v1476 = vld [vmem:[%s4] sm:$0x3]
    %vm1477 = vcmask 15360
    %v1479 = vsel %vm1477, %v1474, 0
    %v1482 = vsel %vm1477, %v1475, 0
    %vm1484 = vcmask 1041408
    %v1486 = vsel %vm1484, %v1476, 0
    %1488 = vmatprep.subr.mxu0 0.0
    %1489 = vmatpush1.msra.mxu0 0.0
    %1490 = vmatprep.subr.mxu0 0.0
    %1491 = vmatpush1.msra.mxu0 0.0
    %1492 = vmatprep.subr.mxu0 0.0
    %1493 = vmatpush1.msra.mxu0 0.0
    %1494 = vmatprep.subr.mxu0 0.0
    %1495 = vmatpush1.msra.mxu0 0.0
    %1496 = vmatprep.subr.mxu0 0.0
    %1497 = vmatpush1.msra.mxu0 0.0
    %1498 = vmatprep.subr.mxu0 0.0
    %1499 = vmatpush1.msra.mxu0 0.0
    %1500 = vmatprep.subr.mxu0 0.0
    %1501 = vmatpush1.msra.mxu0 0.0
    %1502 = vmatprep.subr.mxu0 0.0
    %1503 = vmatpush1.msra.mxu0 0.0
    %1504 = vmatprep.subr.mxu0 0.0
    %1505 = vmatpush1.msra.mxu0 0.0
    %1506 = vmatprep.subr.mxu0 0.0
    %1507 = vmatpush1.msra.mxu0 0.0
    %1508 = vmatprep.subr.mxu0 0.0
    %1509 = vmatpush1.msra.mxu0 0.0
    %1510 = vmatprep.subr.mxu0 0.0
    %1511 = vmatpush1.msra.mxu0 0.0
    %1512 = vmatprep.subr.mxu0 0.0
    %1513 = vmatpush1.msra.mxu0 0.0
    %1514 = vmatprep.subr.mxu0 0.0
    %1515 = vmatpush1.msra.mxu0 0.0
    %1516 = vmatprep.subr.mxu0 0.0
    %1517 = vmatpush1.msra.mxu0 0.0
    %1518 = vmatprep.subr.mxu0 0.0
    %v1519 = vand.u32 %v1486, 4294901760
    %1520 = vmatpush1.msra.mxu0 %v1519
    %1521 = vmatprep.subr.mxu0 0.0
    %1522 = vmatpush2.msra.mxu0 0.0
    %1523 = vmatprep.subr.mxu0 0.0
    %1524 = vmatpush2.msra.mxu0 0.0
    %1525 = vmatprep.subr.mxu0 0.0
    %1526 = vmatpush2.msra.mxu0 0.0
    %1527 = vmatprep.subr.mxu0 0.0
    %1528 = vmatpush2.msra.mxu0 0.0
    %1529 = vmatprep.subr.mxu0 0.0
    %1530 = vmatpush2.msra.mxu0 0.0
    %1531 = vmatprep.subr.mxu0 0.0
    %1532 = vmatpush2.msra.mxu0 0.0
    %1533 = vmatprep.subr.mxu0 0.0
    %1534 = vmatpush2.msra.mxu0 0.0
    %1535 = vmatprep.subr.mxu0 0.0
    %1536 = vmatpush2.msra.mxu0 0.0
    %1537 = vmatprep.subr.mxu0 0.0
    %1538 = vmatpush2.msra.mxu0 0.0
    %1539 = vmatprep.subr.mxu0 0.0
    %1540 = vmatpush2.msra.mxu0 0.0
    %1541 = vmatprep.subr.mxu0 0.0
    %1542 = vmatpush2.msra.mxu0 0.0
    %1543 = vmatprep.subr.mxu0 0.0
    %1544 = vmatpush2.msra.mxu0 0.0
    %1545 = vmatprep.subr.mxu0 0.0
    %1546 = vmatpush2.msra.mxu0 0.0
    %1547 = vmatprep.subr.mxu0 0.0
    %1548 = vmatpush2.msra.mxu0 0.0
    %1549 = vmatprep.subr.mxu0 0.0
    %1550 = vmatpush2.msra.mxu0 0.0
    %1551 = vmatprep.subr.mxu0 0.0
    %1552 = vmatpush2.msra.mxu0 0.0
    %1553 = vmatprep.mubr.f32.mxu0 0.0
    %v1554 = vand.u32 %v1479, 4294901760
    %v1555 = vsub.f32 %v1479, %v1554
    %v1556 = vand.u32 %v1555, 4294901760
    %v1557 = vsub.f32 %v1555, %v1556
    %v1558 = vand.u32 %v1557, 4294901760
    %1559 = vmatmul.mubr.f32.gmra.mxu0 %v1558
    %v1560 = vpop.f32.mrf.mxu0
    %v1561 = vadd.f32 0.0, %v1560
    %v1562 = vpop.f32.mrf.mxu0
    %1563 = vmatprep.mubr.f32.mxu0 0.0
    %v1564 = vand.u32 %v1482, 4294901760
    %v1565 = vsub.f32 %v1482, %v1564
    %v1566 = vand.u32 %v1565, 4294901760
    %v1567 = vsub.f32 %v1565, %v1566
    %v1568 = vand.u32 %v1567, 4294901760
    %1569 = vmatmul.mubr.f32.gmra.mxu0 %v1568
    %v1570 = vpop.f32.mrf.mxu0
    %v1571 = vadd.f32 0.0, %v1570
    %v1572 = vpop.f32.mrf.mxu0
    %1573 = vdwg.mxu0
    %1574 = vmatprep.subr.mxu0 0.0
    %1575 = vmatpush1.msra.mxu0 0.0
    %1576 = vmatprep.subr.mxu0 0.0
    %1577 = vmatpush1.msra.mxu0 0.0
    %1578 = vmatprep.subr.mxu0 0.0
    %1579 = vmatpush1.msra.mxu0 0.0
    %1580 = vmatprep.subr.mxu0 0.0
    %1581 = vmatpush1.msra.mxu0 0.0
    %1582 = vmatprep.subr.mxu0 0.0
    %1583 = vmatpush1.msra.mxu0 0.0
    %1584 = vmatprep.subr.mxu0 0.0
    %1585 = vmatpush1.msra.mxu0 0.0
    %1586 = vmatprep.subr.mxu0 0.0
    %1587 = vmatpush1.msra.mxu0 0.0
    %1588 = vmatprep.subr.mxu0 0.0
    %1589 = vmatpush1.msra.mxu0 0.0
    %1590 = vmatprep.subr.mxu0 0.0
    %1591 = vmatpush1.msra.mxu0 0.0
    %1592 = vmatprep.subr.mxu0 0.0
    %1593 = vmatpush1.msra.mxu0 0.0
    %1594 = vmatprep.subr.mxu0 0.0
    %1595 = vmatpush1.msra.mxu0 0.0
    %1596 = vmatprep.subr.mxu0 0.0
    %1597 = vmatpush1.msra.mxu0 0.0
    %1598 = vmatprep.subr.mxu0 0.0
    %1599 = vmatpush1.msra.mxu0 0.0
    %1600 = vmatprep.subr.mxu0 0.0
    %1601 = vmatpush1.msra.mxu0 0.0
    %1602 = vmatprep.subr.mxu0 0.0
    %1603 = vmatpush1.msra.mxu0 0.0
    %1604 = vmatprep.subr.mxu0 0.0
    %v1605 = vand.u32 %v1486, 4294901760
    %v1606 = vsub.f32 %v1486, %v1605
    %v1607 = vand.u32 %v1606, 4294901760
    %v1608 = vsub.f32 %v1606, %v1607
    %v1609 = vand.u32 %v1608, 4294901760
    %1610 = vmatpush1.msra.mxu0 %v1609
    %1611 = vmatprep.subr.mxu0 0.0
    %1612 = vmatpush2.msra.mxu0 0.0
    %1613 = vmatprep.subr.mxu0 0.0
    %1614 = vmatpush2.msra.mxu0 0.0
    %1615 = vmatprep.subr.mxu0 0.0
    %1616 = vmatpush2.msra.mxu0 0.0
    %1617 = vmatprep.subr.mxu0 0.0
    %1618 = vmatpush2.msra.mxu0 0.0
    %1619 = vmatprep.subr.mxu0 0.0
    %1620 = vmatpush2.msra.mxu0 0.0
    %1621 = vmatprep.subr.mxu0 0.0
    %1622 = vmatpush2.msra.mxu0 0.0
    %1623 = vmatprep.subr.mxu0 0.0
    %1624 = vmatpush2.msra.mxu0 0.0
    %1625 = vmatprep.subr.mxu0 0.0
    %1626 = vmatpush2.msra.mxu0 0.0
    %1627 = vmatprep.subr.mxu0 0.0
    %1628 = vmatpush2.msra.mxu0 0.0
    %1629 = vmatprep.subr.mxu0 0.0
    %1630 = vmatpush2.msra.mxu0 0.0
    %1631 = vmatprep.subr.mxu0 0.0
    %1632 = vmatpush2.msra.mxu0 0.0
    %1633 = vmatprep.subr.mxu0 0.0
    %1634 = vmatpush2.msra.mxu0 0.0
    %1635 = vmatprep.subr.mxu0 0.0
    %1636 = vmatpush2.msra.mxu0 0.0
    %1637 = vmatprep.subr.mxu0 0.0
    %1638 = vmatpush2.msra.mxu0 0.0
    %1639 = vmatprep.subr.mxu0 0.0
    %1640 = vmatpush2.msra.mxu0 0.0
    %1641 = vmatprep.subr.mxu0 0.0
    %1642 = vmatpush2.msra.mxu0 0.0
    %1643 = vmatprep.mubr.f32.mxu0 0.0
    %v1644 = vand.u32 %v1479, 4294901760
    %1645 = vmatmul.mubr.f32.gmra.mxu0 %v1644
    %v1646 = vpop.f32.mrf.mxu0
    %v1647 = vadd.f32 %v1561, %v1646
    %v1648 = vpop.f32.mrf.mxu0
    %1649 = vmatprep.mubr.f32.mxu0 0.0
    %v1650 = vand.u32 %v1482, 4294901760
    %1651 = vmatmul.mubr.f32.gmra.mxu0 %v1650
    %v1652 = vpop.f32.mrf.mxu0
    %v1653 = vadd.f32 %v1571, %v1652
    %v1654 = vpop.f32.mrf.mxu0
    %1655 = vdwg.mxu0
    %1656 = vmatprep.subr.mxu0 0.0
    %1657 = vmatpush1.msra.mxu0 0.0
    %1658 = vmatprep.subr.mxu0 0.0
    %1659 = vmatpush1.msra.mxu0 0.0
    %1660 = vmatprep.subr.mxu0 0.0
    %1661 = vmatpush1.msra.mxu0 0.0
    %1662 = vmatprep.subr.mxu0 0.0
    %1663 = vmatpush1.msra.mxu0 0.0
    %1664 = vmatprep.subr.mxu0 0.0
    %1665 = vmatpush1.msra.mxu0 0.0
    %1666 = vmatprep.subr.mxu0 0.0
    %1667 = vmatpush1.msra.mxu0 0.0
    %1668 = vmatprep.subr.mxu0 0.0
    %1669 = vmatpush1.msra.mxu0 0.0
    %1670 = vmatprep.subr.mxu0 0.0
    %1671 = vmatpush1.msra.mxu0 0.0
    %1672 = vmatprep.subr.mxu0 0.0
    %1673 = vmatpush1.msra.mxu0 0.0
    %1674 = vmatprep.subr.mxu0 0.0
    %1675 = vmatpush1.msra.mxu0 0.0
    %1676 = vmatprep.subr.mxu0 0.0
    %1677 = vmatpush1.msra.mxu0 0.0
    %1678 = vmatprep.subr.mxu0 0.0
    %1679 = vmatpush1.msra.mxu0 0.0
    %1680 = vmatprep.subr.mxu0 0.0
    %1681 = vmatpush1.msra.mxu0 0.0
    %1682 = vmatprep.subr.mxu0 0.0
    %1683 = vmatpush1.msra.mxu0 0.0
    %1684 = vmatprep.subr.mxu0 0.0
    %1685 = vmatpush1.msra.mxu0 0.0
    %1686 = vmatprep.subr.mxu0 0.0
    %v1687 = vand.u32 %v1486, 4294901760
    %v1688 = vsub.f32 %v1486, %v1687
    %1689 = vmatpush1.msra.mxu0 %v1688
    %1690 = vmatprep.subr.mxu0 0.0
    %1691 = vmatpush2.msra.mxu0 0.0
    %1692 = vmatprep.subr.mxu0 0.0
    %1693 = vmatpush2.msra.mxu0 0.0
    %1694 = vmatprep.subr.mxu0 0.0
    %1695 = vmatpush2.msra.mxu0 0.0
    %1696 = vmatprep.subr.mxu0 0.0
    %1697 = vmatpush2.msra.mxu0 0.0
    %1698 = vmatprep.subr.mxu0 0.0
    %1699 = vmatpush2.msra.mxu0 0.0
    %1700 = vmatprep.subr.mxu0 0.0
    %1701 = vmatpush2.msra.mxu0 0.0
    %1702 = vmatprep.subr.mxu0 0.0
    %1703 = vmatpush2.msra.mxu0 0.0
    %1704 = vmatprep.subr.mxu0 0.0
    %1705 = vmatpush2.msra.mxu0 0.0
    %1706 = vmatprep.subr.mxu0 0.0
    %1707 = vmatpush2.msra.mxu0 0.0
    %1708 = vmatprep.subr.mxu0 0.0
    %1709 = vmatpush2.msra.mxu0 0.0
    %1710 = vmatprep.subr.mxu0 0.0
    %1711 = vmatpush2.msra.mxu0 0.0
    %1712 = vmatprep.subr.mxu0 0.0
    %1713 = vmatpush2.msra.mxu0 0.0
    %1714 = vmatprep.subr.mxu0 0.0
    %1715 = vmatpush2.msra.mxu0 0.0
    %1716 = vmatprep.subr.mxu0 0.0
    %1717 = vmatpush2.msra.mxu0 0.0
    %1718 = vmatprep.subr.mxu0 0.0
    %1719 = vmatpush2.msra.mxu0 0.0
    %1720 = vmatprep.subr.mxu0 0.0
    %1721 = vmatpush2.msra.mxu0 0.0
    %1722 = vmatprep.mubr.f32.mxu0 0.0
    %v1723 = vand.u32 %v1479, 4294901760
    %v1724 = vsub.f32 %v1479, %v1723
    %1725 = vmatmul.mubr.f32.gmra.mxu0 %v1724
    %v1726 = vpop.f32.mrf.mxu0
    %v1727 = vadd.f32 %v1647, %v1726
    %v1728 = vpop.f32.mrf.mxu0
    %1729 = vmatprep.mubr.f32.mxu0 0.0
    %v1730 = vand.u32 %v1482, 4294901760
    %v1731 = vsub.f32 %v1482, %v1730
    %1732 = vmatmul.mubr.f32.gmra.mxu0 %v1731
    %v1733 = vpop.f32.mrf.mxu0
    %v1734 = vadd.f32 %v1653, %v1733
    %v1735 = vpop.f32.mrf.mxu0
    %1736 = vdwg.mxu0
    %1737 = vmatprep.subr.mxu0 0.0
    %1738 = vmatpush1.msra.mxu0 0.0
    %1739 = vmatprep.subr.mxu0 0.0
    %1740 = vmatpush1.msra.mxu0 0.0
    %1741 = vmatprep.subr.mxu0 0.0
    %1742 = vmatpush1.msra.mxu0 0.0
    %1743 = vmatprep.subr.mxu0 0.0
    %1744 = vmatpush1.msra.mxu0 0.0
    %1745 = vmatprep.subr.mxu0 0.0
    %1746 = vmatpush1.msra.mxu0 0.0
    %1747 = vmatprep.subr.mxu0 0.0
    %1748 = vmatpush1.msra.mxu0 0.0
    %1749 = vmatprep.subr.mxu0 0.0
    %1750 = vmatpush1.msra.mxu0 0.0
    %1751 = vmatprep.subr.mxu0 0.0
    %1752 = vmatpush1.msra.mxu0 0.0
    %1753 = vmatprep.subr.mxu0 0.0
    %1754 = vmatpush1.msra.mxu0 0.0
    %1755 = vmatprep.subr.mxu0 0.0
    %1756 = vmatpush1.msra.mxu0 0.0
    %1757 = vmatprep.subr.mxu0 0.0
    %1758 = vmatpush1.msra.mxu0 0.0
    %1759 = vmatprep.subr.mxu0 0.0
    %1760 = vmatpush1.msra.mxu0 0.0
    %1761 = vmatprep.subr.mxu0 0.0
    %1762 = vmatpush1.msra.mxu0 0.0
    %1763 = vmatprep.subr.mxu0 0.0
    %1764 = vmatpush1.msra.mxu0 0.0
    %1765 = vmatprep.subr.mxu0 0.0
    %1766 = vmatpush1.msra.mxu0 0.0
    %1767 = vmatprep.subr.mxu0 0.0
    %v1768 = vand.u32 %v1486, 4294901760
    %1769 = vmatpush1.msra.mxu0 %v1768
    %1770 = vmatprep.subr.mxu0 0.0
    %1771 = vmatpush2.msra.mxu0 0.0
    %1772 = vmatprep.subr.mxu0 0.0
    %1773 = vmatpush2.msra.mxu0 0.0
    %1774 = vmatprep.subr.mxu0 0.0
    %1775 = vmatpush2.msra.mxu0 0.0
    %1776 = vmatprep.subr.mxu0 0.0
    %1777 = vmatpush2.msra.mxu0 0.0
    %1778 = vmatprep.subr.mxu0 0.0
    %1779 = vmatpush2.msra.mxu0 0.0
    %1780 = vmatprep.subr.mxu0 0.0
    %1781 = vmatpush2.msra.mxu0 0.0
    %1782 = vmatprep.subr.mxu0 0.0
    %1783 = vmatpush2.msra.mxu0 0.0
    %1784 = vmatprep.subr.mxu0 0.0
    %1785 = vmatpush2.msra.mxu0 0.0
    %1786 = vmatprep.subr.mxu0 0.0
    %1787 = vmatpush2.msra.mxu0 0.0
    %1788 = vmatprep.subr.mxu0 0.0
    %1789 = vmatpush2.msra.mxu0 0.0
    %1790 = vmatprep.subr.mxu0 0.0
    %1791 = vmatpush2.msra.mxu0 0.0
    %1792 = vmatprep.subr.mxu0 0.0
    %1793 = vmatpush2.msra.mxu0 0.0
    %1794 = vmatprep.subr.mxu0 0.0
    %1795 = vmatpush2.msra.mxu0 0.0
    %1796 = vmatprep.subr.mxu0 0.0
    %1797 = vmatpush2.msra.mxu0 0.0
    %1798 = vmatprep.subr.mxu0 0.0
    %1799 = vmatpush2.msra.mxu0 0.0
    %1800 = vmatprep.subr.mxu0 0.0
    %1801 = vmatpush2.msra.mxu0 0.0
    %1802 = vmatprep.mubr.f32.mxu0 0.0
    %v1803 = vand.u32 %v1479, 4294901760
    %v1804 = vsub.f32 %v1479, %v1803
    %v1805 = vand.u32 %v1804, 4294901760
    %1806 = vmatmul.mubr.f32.gmra.mxu0 %v1805
    %v1807 = vpop.f32.mrf.mxu0
    %v1808 = vadd.f32 %v1727, %v1807
    %v1809 = vpop.f32.mrf.mxu0
    %1810 = vmatprep.mubr.f32.mxu0 0.0
    %v1811 = vand.u32 %v1482, 4294901760
    %v1812 = vsub.f32 %v1482, %v1811
    %v1813 = vand.u32 %v1812, 4294901760
    %1814 = vmatmul.mubr.f32.gmra.mxu0 %v1813
    %v1815 = vpop.f32.mrf.mxu0
    %v1816 = vadd.f32 %v1734, %v1815
    %v1817 = vpop.f32.mrf.mxu0
    %1818 = vdwg.mxu0
    %1819 = vmatprep.subr.mxu0 0.0
    %1820 = vmatpush1.msra.mxu0 0.0
    %1821 = vmatprep.subr.mxu0 0.0
    %1822 = vmatpush1.msra.mxu0 0.0
    %1823 = vmatprep.subr.mxu0 0.0
    %1824 = vmatpush1.msra.mxu0 0.0
    %1825 = vmatprep.subr.mxu0 0.0
    %1826 = vmatpush1.msra.mxu0 0.0
    %1827 = vmatprep.subr.mxu0 0.0
    %1828 = vmatpush1.msra.mxu0 0.0
    %1829 = vmatprep.subr.mxu0 0.0
    %1830 = vmatpush1.msra.mxu0 0.0
    %1831 = vmatprep.subr.mxu0 0.0
    %1832 = vmatpush1.msra.mxu0 0.0
    %1833 = vmatprep.subr.mxu0 0.0
    %1834 = vmatpush1.msra.mxu0 0.0
    %1835 = vmatprep.subr.mxu0 0.0
    %1836 = vmatpush1.msra.mxu0 0.0
    %1837 = vmatprep.subr.mxu0 0.0
    %1838 = vmatpush1.msra.mxu0 0.0
    %1839 = vmatprep.subr.mxu0 0.0
    %1840 = vmatpush1.msra.mxu0 0.0
    %1841 = vmatprep.subr.mxu0 0.0
    %1842 = vmatpush1.msra.mxu0 0.0
    %1843 = vmatprep.subr.mxu0 0.0
    %1844 = vmatpush1.msra.mxu0 0.0
    %1845 = vmatprep.subr.mxu0 0.0
    %1846 = vmatpush1.msra.mxu0 0.0
    %1847 = vmatprep.subr.mxu0 0.0
    %1848 = vmatpush1.msra.mxu0 0.0
    %1849 = vmatprep.subr.mxu0 0.0
    %v1850 = vand.u32 %v1486, 4294901760
    %v1851 = vsub.f32 %v1486, %v1850
    %v1852 = vand.u32 %v1851, 4294901760
    %1853 = vmatpush1.msra.mxu0 %v1852
    %1854 = vmatprep.subr.mxu0 0.0
    %1855 = vmatpush2.msra.mxu0 0.0
    %1856 = vmatprep.subr.mxu0 0.0
    %1857 = vmatpush2.msra.mxu0 0.0
    %1858 = vmatprep.subr.mxu0 0.0
    %1859 = vmatpush2.msra.mxu0 0.0
    %1860 = vmatprep.subr.mxu0 0.0
    %1861 = vmatpush2.msra.mxu0 0.0
    %1862 = vmatprep.subr.mxu0 0.0
    %1863 = vmatpush2.msra.mxu0 0.0
    %1864 = vmatprep.subr.mxu0 0.0
    %1865 = vmatpush2.msra.mxu0 0.0
    %1866 = vmatprep.subr.mxu0 0.0
    %1867 = vmatpush2.msra.mxu0 0.0
    %1868 = vmatprep.subr.mxu0 0.0
    %1869 = vmatpush2.msra.mxu0 0.0
    %1870 = vmatprep.subr.mxu0 0.0
    %1871 = vmatpush2.msra.mxu0 0.0
    %1872 = vmatprep.subr.mxu0 0.0
    %1873 = vmatpush2.msra.mxu0 0.0
    %1874 = vmatprep.subr.mxu0 0.0
    %1875 = vmatpush2.msra.mxu0 0.0
    %1876 = vmatprep.subr.mxu0 0.0
    %1877 = vmatpush2.msra.mxu0 0.0
    %1878 = vmatprep.subr.mxu0 0.0
    %1879 = vmatpush2.msra.mxu0 0.0
    %1880 = vmatprep.subr.mxu0 0.0
    %1881 = vmatpush2.msra.mxu0 0.0
    %1882 = vmatprep.subr.mxu0 0.0
    %1883 = vmatpush2.msra.mxu0 0.0
    %1884 = vmatprep.subr.mxu0 0.0
    %1885 = vmatpush2.msra.mxu0 0.0
    %1886 = vmatprep.mubr.f32.mxu0 0.0
    %v1887 = vand.u32 %v1479, 4294901760
    %1888 = vmatmul.mubr.f32.gmra.mxu0 %v1887
    %v1889 = vpop.f32.mrf.mxu0
    %v1890 = vadd.f32 %v1808, %v1889
    %v1891 = vpop.f32.mrf.mxu0
    %1892 = vmatprep.mubr.f32.mxu0 0.0
    %v1893 = vand.u32 %v1482, 4294901760
    %1894 = vmatmul.mubr.f32.gmra.mxu0 %v1893
    %v1895 = vpop.f32.mrf.mxu0
    %v1896 = vadd.f32 %v1816, %v1895
    %v1897 = vpop.f32.mrf.mxu0
    %1898 = vdwg.mxu0
    %1899 = vmatprep.subr.mxu0 0.0
    %1900 = vmatpush1.msra.mxu0 0.0
    %1901 = vmatprep.subr.mxu0 0.0
    %1902 = vmatpush1.msra.mxu0 0.0
    %1903 = vmatprep.subr.mxu0 0.0
    %1904 = vmatpush1.msra.mxu0 0.0
    %1905 = vmatprep.subr.mxu0 0.0
    %1906 = vmatpush1.msra.mxu0 0.0
    %1907 = vmatprep.subr.mxu0 0.0
    %1908 = vmatpush1.msra.mxu0 0.0
    %1909 = vmatprep.subr.mxu0 0.0
    %1910 = vmatpush1.msra.mxu0 0.0
    %1911 = vmatprep.subr.mxu0 0.0
    %1912 = vmatpush1.msra.mxu0 0.0
    %1913 = vmatprep.subr.mxu0 0.0
    %1914 = vmatpush1.msra.mxu0 0.0
    %1915 = vmatprep.subr.mxu0 0.0
    %1916 = vmatpush1.msra.mxu0 0.0
    %1917 = vmatprep.subr.mxu0 0.0
    %1918 = vmatpush1.msra.mxu0 0.0
    %1919 = vmatprep.subr.mxu0 0.0
    %1920 = vmatpush1.msra.mxu0 0.0
    %1921 = vmatprep.subr.mxu0 0.0
    %1922 = vmatpush1.msra.mxu0 0.0
    %1923 = vmatprep.subr.mxu0 0.0
    %1924 = vmatpush1.msra.mxu0 0.0
    %1925 = vmatprep.subr.mxu0 0.0
    %1926 = vmatpush1.msra.mxu0 0.0
    %1927 = vmatprep.subr.mxu0 0.0
    %1928 = vmatpush1.msra.mxu0 0.0
    %1929 = vmatprep.subr.mxu0 0.0
    %v1930 = vand.u32 %v1486, 4294901760
    %1931 = vmatpush1.msra.mxu0 %v1930
    %1932 = vmatprep.subr.mxu0 0.0
    %1933 = vmatpush2.msra.mxu0 0.0
    %1934 = vmatprep.subr.mxu0 0.0
    %1935 = vmatpush2.msra.mxu0 0.0
    %1936 = vmatprep.subr.mxu0 0.0
    %1937 = vmatpush2.msra.mxu0 0.0
    %1938 = vmatprep.subr.mxu0 0.0
    %1939 = vmatpush2.msra.mxu0 0.0
    %1940 = vmatprep.subr.mxu0 0.0
    %1941 = vmatpush2.msra.mxu0 0.0
    %1942 = vmatprep.subr.mxu0 0.0
    %1943 = vmatpush2.msra.mxu0 0.0
    %1944 = vmatprep.subr.mxu0 0.0
    %1945 = vmatpush2.msra.mxu0 0.0
    %1946 = vmatprep.subr.mxu0 0.0
    %1947 = vmatpush2.msra.mxu0 0.0
    %1948 = vmatprep.subr.mxu0 0.0
    %1949 = vmatpush2.msra.mxu0 0.0
    %1950 = vmatprep.subr.mxu0 0.0
    %1951 = vmatpush2.msra.mxu0 0.0
    %1952 = vmatprep.subr.mxu0 0.0
    %1953 = vmatpush2.msra.mxu0 0.0
    %1954 = vmatprep.subr.mxu0 0.0
    %1955 = vmatpush2.msra.mxu0 0.0
    %1956 = vmatprep.subr.mxu0 0.0
    %1957 = vmatpush2.msra.mxu0 0.0
    %1958 = vmatprep.subr.mxu0 0.0
    %1959 = vmatpush2.msra.mxu0 0.0
    %1960 = vmatprep.subr.mxu0 0.0
    %1961 = vmatpush2.msra.mxu0 0.0
    %1962 = vmatprep.subr.mxu0 0.0
    %1963 = vmatpush2.msra.mxu0 0.0
    %1964 = vmatprep.mubr.f32.mxu0 0.0
    %v1965 = vand.u32 %v1479, 4294901760
    %1966 = vmatmul.mubr.f32.gmra.mxu0 %v1965
    %v1967 = vpop.f32.mrf.mxu0
    %v1968 = vadd.f32 %v1890, %v1967
    %v1969 = vpop.f32.mrf.mxu0
    %1970 = vmatprep.mubr.f32.mxu0 0.0
    %v1971 = vand.u32 %v1482, 4294901760
    %1972 = vmatmul.mubr.f32.gmra.mxu0 %v1971
    %v1973 = vpop.f32.mrf.mxu0
    %v1974 = vadd.f32 %v1896, %v1973
    %v1975 = vpop.f32.mrf.mxu0
    %1976 = vdwg.mxu0
    %v1977 = vxor.u32 %v1968, 2147483648
    %v1978 = vxor.u32 %v1974, 2147483648
    %v1979 = vmul.f32 %v1977, 1.442695
    %v1980 = vpow.pop %v1979
    %v1981 = vmul.f32 %v1978, 1.442695
    %v1982 = vpow.pop %v1981
    %v1983 = vadd.f32 %v1980, 1.0
    %v1984 = vadd.f32 %v1982, 1.0
    %v1985 = vrcp.pop %v1983
    %v1986 = vmul.f32 1.0, %v1985
    %v1987 = vrcp.pop %v1984
    %v1988 = vmul.f32 1.0, %v1987
    %v1989 = vld [vmem:[%s2] sm:$0xff]
    %v1990 = vld [vmem:[%s2 + $0x8] sm:$0xff]
    %v1992 = vsel %vm978, %v1986, 0
    %v1995 = vsel %vm978, %v1988, 0
    %1997 = vmatprep.subr.mxu0 0.0
    %1998 = vmatpush1.msra.mxu0 0.0
    %1999 = vmatprep.subr.mxu0 0.0
    %2000 = vmatpush1.msra.mxu0 0.0
    %2001 = vmatprep.subr.mxu0 0.0
    %2002 = vmatpush1.msra.mxu0 0.0
    %2003 = vmatprep.subr.mxu0 0.0
    %2004 = vmatpush1.msra.mxu0 0.0
    %2005 = vmatprep.subr.mxu0 0.0
    %2006 = vmatpush1.msra.mxu0 0.0
    %2007 = vmatprep.subr.mxu0 0.0
    %2008 = vmatpush1.msra.mxu0 0.0
    %2009 = vmatprep.subr.mxu0 0.0
    %2010 = vmatpush1.msra.mxu0 0.0
    %2011 = vmatprep.subr.mxu0 0.0
    %2012 = vmatpush1.msra.mxu0 0.0
    %2013 = vmatprep.subr.mxu0 0.0
    %2014 = vmatpush1.msra.mxu0 0.0
    %2015 = vmatprep.subr.mxu0 0.0
    %2016 = vmatpush1.msra.mxu0 0.0
    %2017 = vmatprep.subr.mxu0 0.0
    %2018 = vmatpush1.msra.mxu0 0.0
    %2019 = vmatprep.subr.mxu0 0.0
    %2020 = vmatpush1.msra.mxu0 0.0
    %2021 = vmatprep.subr.mxu0 0.0
    %2022 = vmatpush1.msra.mxu0 0.0
    %2023 = vmatprep.subr.mxu0 0.0
    %2024 = vmatpush1.msra.mxu0 0.0
    %2025 = vmatprep.subr.mxu0 0.0
    %2026 = vmatpush1.msra.mxu0 0.0
    %v2027 = vand.u32 %v1990, 4294901760
    %2028 = vmatprep.subr.mxu0 %v2027
    %v2029 = vand.u32 %v1989, 4294901760
    %2030 = vmatpush1.msra.mxu0 %v2029
    %2031 = vmatprep.subr.mxu0 0.0
    %2032 = vmatpush2.msra.mxu0 0.0
    %2033 = vmatprep.subr.mxu0 0.0
    %2034 = vmatpush2.msra.mxu0 0.0
    %2035 = vmatprep.subr.mxu0 0.0
    %2036 = vmatpush2.msra.mxu0 0.0
    %2037 = vmatprep.subr.mxu0 0.0
    %2038 = vmatpush2.msra.mxu0 0.0
    %2039 = vmatprep.subr.mxu0 0.0
    %2040 = vmatpush2.msra.mxu0 0.0
    %2041 = vmatprep.subr.mxu0 0.0
    %2042 = vmatpush2.msra.mxu0 0.0
    %2043 = vmatprep.subr.mxu0 0.0
    %2044 = vmatpush2.msra.mxu0 0.0
    %2045 = vmatprep.subr.mxu0 0.0
    %2046 = vmatpush2.msra.mxu0 0.0
    %2047 = vmatprep.subr.mxu0 0.0
    %2048 = vmatpush2.msra.mxu0 0.0
    %2049 = vmatprep.subr.mxu0 0.0
    %2050 = vmatpush2.msra.mxu0 0.0
    %2051 = vmatprep.subr.mxu0 0.0
    %2052 = vmatpush2.msra.mxu0 0.0
    %2053 = vmatprep.subr.mxu0 0.0
    %2054 = vmatpush2.msra.mxu0 0.0
    %2055 = vmatprep.subr.mxu0 0.0
    %2056 = vmatpush2.msra.mxu0 0.0
    %2057 = vmatprep.subr.mxu0 0.0
    %2058 = vmatpush2.msra.mxu0 0.0
    %2059 = vmatprep.subr.mxu0 0.0
    %2060 = vmatpush2.msra.mxu0 0.0
    %2061 = vmatprep.subr.mxu0 0.0
    %2062 = vmatpush2.msra.mxu0 0.0
    %2063 = vmatprep.mubr.f32.mxu0 0.0
    %v2064 = vand.u32 %v1992, 4294901760
    %v2065 = vsub.f32 %v1992, %v2064
    %v2066 = vand.u32 %v2065, 4294901760
    %v2067 = vsub.f32 %v2065, %v2066
    %v2068 = vand.u32 %v2067, 4294901760
    %2069 = vmatmul.mubr.f32.gmra.mxu0 %v2068
    %v2070 = vpop.f32.mrf.mxu0
    %v2071 = vadd.f32 0.0, %v2070
    %v2072 = vpop.f32.mrf.mxu0
    %v2073 = vadd.f32 0.0, %v2072
    %2074 = vmatprep.mubr.f32.mxu0 0.0
    %v2075 = vand.u32 %v1995, 4294901760
    %v2076 = vsub.f32 %v1995, %v2075
    %v2077 = vand.u32 %v2076, 4294901760
    %v2078 = vsub.f32 %v2076, %v2077
    %v2079 = vand.u32 %v2078, 4294901760
    %2080 = vmatmul.mubr.f32.gmra.mxu0 %v2079
    %v2081 = vpop.f32.mrf.mxu0
    %v2082 = vadd.f32 0.0, %v2081
    %v2083 = vpop.f32.mrf.mxu0
    %v2084 = vadd.f32 0.0, %v2083
    %2085 = vdwg.mxu0
    %2086 = vmatprep.subr.mxu0 0.0
    %2087 = vmatpush1.msra.mxu0 0.0
    %2088 = vmatprep.subr.mxu0 0.0
    %2089 = vmatpush1.msra.mxu0 0.0
    %2090 = vmatprep.subr.mxu0 0.0
    %2091 = vmatpush1.msra.mxu0 0.0
    %2092 = vmatprep.subr.mxu0 0.0
    %2093 = vmatpush1.msra.mxu0 0.0
    %2094 = vmatprep.subr.mxu0 0.0
    %2095 = vmatpush1.msra.mxu0 0.0
    %2096 = vmatprep.subr.mxu0 0.0
    %2097 = vmatpush1.msra.mxu0 0.0
    %2098 = vmatprep.subr.mxu0 0.0
    %2099 = vmatpush1.msra.mxu0 0.0
    %2100 = vmatprep.subr.mxu0 0.0
    %2101 = vmatpush1.msra.mxu0 0.0
    %2102 = vmatprep.subr.mxu0 0.0
    %2103 = vmatpush1.msra.mxu0 0.0
    %2104 = vmatprep.subr.mxu0 0.0
    %2105 = vmatpush1.msra.mxu0 0.0
    %2106 = vmatprep.subr.mxu0 0.0
    %2107 = vmatpush1.msra.mxu0 0.0
    %2108 = vmatprep.subr.mxu0 0.0
    %2109 = vmatpush1.msra.mxu0 0.0
    %2110 = vmatprep.subr.mxu0 0.0
    %2111 = vmatpush1.msra.mxu0 0.0
    %2112 = vmatprep.subr.mxu0 0.0
    %2113 = vmatpush1.msra.mxu0 0.0
    %2114 = vmatprep.subr.mxu0 0.0
    %2115 = vmatpush1.msra.mxu0 0.0
    %v2116 = vand.u32 %v1990, 4294901760
    %v2117 = vsub.f32 %v1990, %v2116
    %v2118 = vand.u32 %v2117, 4294901760
    %v2119 = vsub.f32 %v2117, %v2118
    %v2120 = vand.u32 %v2119, 4294901760
    %2121 = vmatprep.subr.mxu0 %v2120
    %v2122 = vand.u32 %v1989, 4294901760
    %v2123 = vsub.f32 %v1989, %v2122
    %v2124 = vand.u32 %v2123, 4294901760
    %v2125 = vsub.f32 %v2123, %v2124
    %v2126 = vand.u32 %v2125, 4294901760
    %2127 = vmatpush1.msra.mxu0 %v2126
    %2128 = vmatprep.subr.mxu0 0.0
    %2129 = vmatpush2.msra.mxu0 0.0
    %2130 = vmatprep.subr.mxu0 0.0
    %2131 = vmatpush2.msra.mxu0 0.0
    %2132 = vmatprep.subr.mxu0 0.0
    %2133 = vmatpush2.msra.mxu0 0.0
    %2134 = vmatprep.subr.mxu0 0.0
    %2135 = vmatpush2.msra.mxu0 0.0
    %2136 = vmatprep.subr.mxu0 0.0
    %2137 = vmatpush2.msra.mxu0 0.0
    %2138 = vmatprep.subr.mxu0 0.0
    %2139 = vmatpush2.msra.mxu0 0.0
    %2140 = vmatprep.subr.mxu0 0.0
    %2141 = vmatpush2.msra.mxu0 0.0
    %2142 = vmatprep.subr.mxu0 0.0
    %2143 = vmatpush2.msra.mxu0 0.0
    %2144 = vmatprep.subr.mxu0 0.0
    %2145 = vmatpush2.msra.mxu0 0.0
    %2146 = vmatprep.subr.mxu0 0.0
    %2147 = vmatpush2.msra.mxu0 0.0
    %2148 = vmatprep.subr.mxu0 0.0
    %2149 = vmatpush2.msra.mxu0 0.0
    %2150 = vmatprep.subr.mxu0 0.0
    %2151 = vmatpush2.msra.mxu0 0.0
    %2152 = vmatprep.subr.mxu0 0.0
    %2153 = vmatpush2.msra.mxu0 0.0
    %2154 = vmatprep.subr.mxu0 0.0
    %2155 = vmatpush2.msra.mxu0 0.0
    %2156 = vmatprep.subr.mxu0 0.0
    %2157 = vmatpush2.msra.mxu0 0.0
    %2158 = vmatprep.subr.mxu0 0.0
    %2159 = vmatpush2.msra.mxu0 0.0
    %2160 = vmatprep.mubr.f32.mxu0 0.0
    %v2161 = vand.u32 %v1992, 4294901760
    %2162 = vmatmul.mubr.f32.gmra.mxu0 %v2161
    %v2163 = vpop.f32.mrf.mxu0
    %v2164 = vadd.f32 %v2071, %v2163
    %v2165 = vpop.f32.mrf.mxu0
    %v2166 = vadd.f32 %v2073, %v2165
    %2167 = vmatprep.mubr.f32.mxu0 0.0
    %v2168 = vand.u32 %v1995, 4294901760
    %2169 = vmatmul.mubr.f32.gmra.mxu0 %v2168
    %v2170 = vpop.f32.mrf.mxu0
    %v2171 = vadd.f32 %v2082, %v2170
    %v2172 = vpop.f32.mrf.mxu0
    %v2173 = vadd.f32 %v2084, %v2172
    %2174 = vdwg.mxu0
    %2175 = vmatprep.subr.mxu0 0.0
    %2176 = vmatpush1.msra.mxu0 0.0
    %2177 = vmatprep.subr.mxu0 0.0
    %2178 = vmatpush1.msra.mxu0 0.0
    %2179 = vmatprep.subr.mxu0 0.0
    %2180 = vmatpush1.msra.mxu0 0.0
    %2181 = vmatprep.subr.mxu0 0.0
    %2182 = vmatpush1.msra.mxu0 0.0
    %2183 = vmatprep.subr.mxu0 0.0
    %2184 = vmatpush1.msra.mxu0 0.0
    %2185 = vmatprep.subr.mxu0 0.0
    %2186 = vmatpush1.msra.mxu0 0.0
    %2187 = vmatprep.subr.mxu0 0.0
    %2188 = vmatpush1.msra.mxu0 0.0
    %2189 = vmatprep.subr.mxu0 0.0
    %2190 = vmatpush1.msra.mxu0 0.0
    %2191 = vmatprep.subr.mxu0 0.0
    %2192 = vmatpush1.msra.mxu0 0.0
    %2193 = vmatprep.subr.mxu0 0.0
    %2194 = vmatpush1.msra.mxu0 0.0
    %2195 = vmatprep.subr.mxu0 0.0
    %2196 = vmatpush1.msra.mxu0 0.0
    %2197 = vmatprep.subr.mxu0 0.0
    %2198 = vmatpush1.msra.mxu0 0.0
    %2199 = vmatprep.subr.mxu0 0.0
    %2200 = vmatpush1.msra.mxu0 0.0
    %2201 = vmatprep.subr.mxu0 0.0
    %2202 = vmatpush1.msra.mxu0 0.0
    %2203 = vmatprep.subr.mxu0 0.0
    %2204 = vmatpush1.msra.mxu0 0.0
    %v2205 = vand.u32 %v1990, 4294901760
    %v2206 = vsub.f32 %v1990, %v2205
    %2207 = vmatprep.subr.mxu0 %v2206
    %v2208 = vand.u32 %v1989, 4294901760
    %v2209 = vsub.f32 %v1989, %v2208
    %2210 = vmatpush1.msra.mxu0 %v2209
    %2211 = vmatprep.subr.mxu0 0.0
    %2212 = vmatpush2.msra.mxu0 0.0
    %2213 = vmatprep.subr.mxu0 0.0
    %2214 = vmatpush2.msra.mxu0 0.0
    %2215 = vmatprep.subr.mxu0 0.0
    %2216 = vmatpush2.msra.mxu0 0.0
    %2217 = vmatprep.subr.mxu0 0.0
    %2218 = vmatpush2.msra.mxu0 0.0
    %2219 = vmatprep.subr.mxu0 0.0
    %2220 = vmatpush2.msra.mxu0 0.0
    %2221 = vmatprep.subr.mxu0 0.0
    %2222 = vmatpush2.msra.mxu0 0.0
    %2223 = vmatprep.subr.mxu0 0.0
    %2224 = vmatpush2.msra.mxu0 0.0
    %2225 = vmatprep.subr.mxu0 0.0
    %2226 = vmatpush2.msra.mxu0 0.0
    %2227 = vmatprep.subr.mxu0 0.0
    %2228 = vmatpush2.msra.mxu0 0.0
    %2229 = vmatprep.subr.mxu0 0.0
    %2230 = vmatpush2.msra.mxu0 0.0
    %2231 = vmatprep.subr.mxu0 0.0
    %2232 = vmatpush2.msra.mxu0 0.0
    %2233 = vmatprep.subr.mxu0 0.0
    %2234 = vmatpush2.msra.mxu0 0.0
    %2235 = vmatprep.subr.mxu0 0.0
    %2236 = vmatpush2.msra.mxu0 0.0
    %2237 = vmatprep.subr.mxu0 0.0
    %2238 = vmatpush2.msra.mxu0 0.0
    %2239 = vmatprep.subr.mxu0 0.0
    %2240 = vmatpush2.msra.mxu0 0.0
    %2241 = vmatprep.subr.mxu0 0.0
    %2242 = vmatpush2.msra.mxu0 0.0
    %2243 = vmatprep.mubr.f32.mxu0 0.0
    %v2244 = vand.u32 %v1992, 4294901760
    %v2245 = vsub.f32 %v1992, %v2244
    %2246 = vmatmul.mubr.f32.gmra.mxu0 %v2245
    %v2247 = vpop.f32.mrf.mxu0
    %v2248 = vadd.f32 %v2164, %v2247
    %v2249 = vpop.f32.mrf.mxu0
    %v2250 = vadd.f32 %v2166, %v2249
    %2251 = vmatprep.mubr.f32.mxu0 0.0
    %v2252 = vand.u32 %v1995, 4294901760
    %v2253 = vsub.f32 %v1995, %v2252
    %2254 = vmatmul.mubr.f32.gmra.mxu0 %v2253
    %v2255 = vpop.f32.mrf.mxu0
    %v2256 = vadd.f32 %v2171, %v2255
    %v2257 = vpop.f32.mrf.mxu0
    %v2258 = vadd.f32 %v2173, %v2257
    %2259 = vdwg.mxu0
    %2260 = vmatprep.subr.mxu0 0.0
    %2261 = vmatpush1.msra.mxu0 0.0
    %2262 = vmatprep.subr.mxu0 0.0
    %2263 = vmatpush1.msra.mxu0 0.0
    %2264 = vmatprep.subr.mxu0 0.0
    %2265 = vmatpush1.msra.mxu0 0.0
    %2266 = vmatprep.subr.mxu0 0.0
    %2267 = vmatpush1.msra.mxu0 0.0
    %2268 = vmatprep.subr.mxu0 0.0
    %2269 = vmatpush1.msra.mxu0 0.0
    %2270 = vmatprep.subr.mxu0 0.0
    %2271 = vmatpush1.msra.mxu0 0.0
    %2272 = vmatprep.subr.mxu0 0.0
    %2273 = vmatpush1.msra.mxu0 0.0
    %2274 = vmatprep.subr.mxu0 0.0
    %2275 = vmatpush1.msra.mxu0 0.0
    %2276 = vmatprep.subr.mxu0 0.0
    %2277 = vmatpush1.msra.mxu0 0.0
    %2278 = vmatprep.subr.mxu0 0.0
    %2279 = vmatpush1.msra.mxu0 0.0
    %2280 = vmatprep.subr.mxu0 0.0
    %2281 = vmatpush1.msra.mxu0 0.0
    %2282 = vmatprep.subr.mxu0 0.0
    %2283 = vmatpush1.msra.mxu0 0.0
    %2284 = vmatprep.subr.mxu0 0.0
    %2285 = vmatpush1.msra.mxu0 0.0
    %2286 = vmatprep.subr.mxu0 0.0
    %2287 = vmatpush1.msra.mxu0 0.0
    %2288 = vmatprep.subr.mxu0 0.0
    %2289 = vmatpush1.msra.mxu0 0.0
    %v2290 = vand.u32 %v1990, 4294901760
    %2291 = vmatprep.subr.mxu0 %v2290
    %v2292 = vand.u32 %v1989, 4294901760
    %2293 = vmatpush1.msra.mxu0 %v2292
    %2294 = vmatprep.subr.mxu0 0.0
    %2295 = vmatpush2.msra.mxu0 0.0
    %2296 = vmatprep.subr.mxu0 0.0
    %2297 = vmatpush2.msra.mxu0 0.0
    %2298 = vmatprep.subr.mxu0 0.0
    %2299 = vmatpush2.msra.mxu0 0.0
    %2300 = vmatprep.subr.mxu0 0.0
    %2301 = vmatpush2.msra.mxu0 0.0
    %2302 = vmatprep.subr.mxu0 0.0
    %2303 = vmatpush2.msra.mxu0 0.0
    %2304 = vmatprep.subr.mxu0 0.0
    %2305 = vmatpush2.msra.mxu0 0.0
    %2306 = vmatprep.subr.mxu0 0.0
    %2307 = vmatpush2.msra.mxu0 0.0
    %2308 = vmatprep.subr.mxu0 0.0
    %2309 = vmatpush2.msra.mxu0 0.0
    %2310 = vmatprep.subr.mxu0 0.0
    %2311 = vmatpush2.msra.mxu0 0.0
    %2312 = vmatprep.subr.mxu0 0.0
    %2313 = vmatpush2.msra.mxu0 0.0
    %2314 = vmatprep.subr.mxu0 0.0
    %2315 = vmatpush2.msra.mxu0 0.0
    %2316 = vmatprep.subr.mxu0 0.0
    %2317 = vmatpush2.msra.mxu0 0.0
    %2318 = vmatprep.subr.mxu0 0.0
    %2319 = vmatpush2.msra.mxu0 0.0
    %2320 = vmatprep.subr.mxu0 0.0
    %2321 = vmatpush2.msra.mxu0 0.0
    %2322 = vmatprep.subr.mxu0 0.0
    %2323 = vmatpush2.msra.mxu0 0.0
    %2324 = vmatprep.subr.mxu0 0.0
    %2325 = vmatpush2.msra.mxu0 0.0
    %2326 = vmatprep.mubr.f32.mxu0 0.0
    %v2327 = vand.u32 %v1992, 4294901760
    %v2328 = vsub.f32 %v1992, %v2327
    %v2329 = vand.u32 %v2328, 4294901760
    %2330 = vmatmul.mubr.f32.gmra.mxu0 %v2329
    %v2331 = vpop.f32.mrf.mxu0
    %v2332 = vadd.f32 %v2248, %v2331
    %v2333 = vpop.f32.mrf.mxu0
    %v2334 = vadd.f32 %v2250, %v2333
    %2335 = vmatprep.mubr.f32.mxu0 0.0
    %v2336 = vand.u32 %v1995, 4294901760
    %v2337 = vsub.f32 %v1995, %v2336
    %v2338 = vand.u32 %v2337, 4294901760
    %2339 = vmatmul.mubr.f32.gmra.mxu0 %v2338
    %v2340 = vpop.f32.mrf.mxu0
    %v2341 = vadd.f32 %v2256, %v2340
    %v2342 = vpop.f32.mrf.mxu0
    %v2343 = vadd.f32 %v2258, %v2342
    %2344 = vdwg.mxu0
    %2345 = vmatprep.subr.mxu0 0.0
    %2346 = vmatpush1.msra.mxu0 0.0
    %2347 = vmatprep.subr.mxu0 0.0
    %2348 = vmatpush1.msra.mxu0 0.0
    %2349 = vmatprep.subr.mxu0 0.0
    %2350 = vmatpush1.msra.mxu0 0.0
    %2351 = vmatprep.subr.mxu0 0.0
    %2352 = vmatpush1.msra.mxu0 0.0
    %2353 = vmatprep.subr.mxu0 0.0
    %2354 = vmatpush1.msra.mxu0 0.0
    %2355 = vmatprep.subr.mxu0 0.0
    %2356 = vmatpush1.msra.mxu0 0.0
    %2357 = vmatprep.subr.mxu0 0.0
    %2358 = vmatpush1.msra.mxu0 0.0
    %2359 = vmatprep.subr.mxu0 0.0
    %2360 = vmatpush1.msra.mxu0 0.0
    %2361 = vmatprep.subr.mxu0 0.0
    %2362 = vmatpush1.msra.mxu0 0.0
    %2363 = vmatprep.subr.mxu0 0.0
    %2364 = vmatpush1.msra.mxu0 0.0
    %2365 = vmatprep.subr.mxu0 0.0
    %2366 = vmatpush1.msra.mxu0 0.0
    %2367 = vmatprep.subr.mxu0 0.0
    %2368 = vmatpush1.msra.mxu0 0.0
    %2369 = vmatprep.subr.mxu0 0.0
    %2370 = vmatpush1.msra.mxu0 0.0
    %2371 = vmatprep.subr.mxu0 0.0
    %2372 = vmatpush1.msra.mxu0 0.0
    %2373 = vmatprep.subr.mxu0 0.0
    %2374 = vmatpush1.msra.mxu0 0.0
    %v2375 = vand.u32 %v1990, 4294901760
    %v2376 = vsub.f32 %v1990, %v2375
    %v2377 = vand.u32 %v2376, 4294901760
    %2378 = vmatprep.subr.mxu0 %v2377
    %v2379 = vand.u32 %v1989, 4294901760
    %v2380 = vsub.f32 %v1989, %v2379
    %v2381 = vand.u32 %v2380, 4294901760
    %2382 = vmatpush1.msra.mxu0 %v2381
    %2383 = vmatprep.subr.mxu0 0.0
    %2384 = vmatpush2.msra.mxu0 0.0
    %2385 = vmatprep.subr.mxu0 0.0
    %2386 = vmatpush2.msra.mxu0 0.0
    %2387 = vmatprep.subr.mxu0 0.0
    %2388 = vmatpush2.msra.mxu0 0.0
    %2389 = vmatprep.subr.mxu0 0.0
    %2390 = vmatpush2.msra.mxu0 0.0
    %2391 = vmatprep.subr.mxu0 0.0
    %2392 = vmatpush2.msra.mxu0 0.0
    %2393 = vmatprep.subr.mxu0 0.0
    %2394 = vmatpush2.msra.mxu0 0.0
    %2395 = vmatprep.subr.mxu0 0.0
    %2396 = vmatpush2.msra.mxu0 0.0
    %2397 = vmatprep.subr.mxu0 0.0
    %2398 = vmatpush2.msra.mxu0 0.0
    %2399 = vmatprep.subr.mxu0 0.0
    %2400 = vmatpush2.msra.mxu0 0.0
    %2401 = vmatprep.subr.mxu0 0.0
    %2402 = vmatpush2.msra.mxu0 0.0
    %2403 = vmatprep.subr.mxu0 0.0
    %2404 = vmatpush2.msra.mxu0 0.0
    %2405 = vmatprep.subr.mxu0 0.0
    %2406 = vmatpush2.msra.mxu0 0.0
    %2407 = vmatprep.subr.mxu0 0.0
    %2408 = vmatpush2.msra.mxu0 0.0
    %2409 = vmatprep.subr.mxu0 0.0
    %2410 = vmatpush2.msra.mxu0 0.0
    %2411 = vmatprep.subr.mxu0 0.0
    %2412 = vmatpush2.msra.mxu0 0.0
    %2413 = vmatprep.subr.mxu0 0.0
    %2414 = vmatpush2.msra.mxu0 0.0
    %2415 = vmatprep.mubr.f32.mxu0 0.0
    %v2416 = vand.u32 %v1992, 4294901760
    %2417 = vmatmul.mubr.f32.gmra.mxu0 %v2416
    %v2418 = vpop.f32.mrf.mxu0
    %v2419 = vadd.f32 %v2332, %v2418
    %v2420 = vpop.f32.mrf.mxu0
    %v2421 = vadd.f32 %v2334, %v2420
    %2422 = vmatprep.mubr.f32.mxu0 0.0
    %v2423 = vand.u32 %v1995, 4294901760
    %2424 = vmatmul.mubr.f32.gmra.mxu0 %v2423
    %v2425 = vpop.f32.mrf.mxu0
    %v2426 = vadd.f32 %v2341, %v2425
    %v2427 = vpop.f32.mrf.mxu0
    %v2428 = vadd.f32 %v2343, %v2427
    %2429 = vdwg.mxu0
    %2430 = vmatprep.subr.mxu0 0.0
    %2431 = vmatpush1.msra.mxu0 0.0
    %2432 = vmatprep.subr.mxu0 0.0
    %2433 = vmatpush1.msra.mxu0 0.0
    %2434 = vmatprep.subr.mxu0 0.0
    %2435 = vmatpush1.msra.mxu0 0.0
    %2436 = vmatprep.subr.mxu0 0.0
    %2437 = vmatpush1.msra.mxu0 0.0
    %2438 = vmatprep.subr.mxu0 0.0
    %2439 = vmatpush1.msra.mxu0 0.0
    %2440 = vmatprep.subr.mxu0 0.0
    %2441 = vmatpush1.msra.mxu0 0.0
    %2442 = vmatprep.subr.mxu0 0.0
    %2443 = vmatpush1.msra.mxu0 0.0
    %2444 = vmatprep.subr.mxu0 0.0
    %2445 = vmatpush1.msra.mxu0 0.0
    %2446 = vmatprep.subr.mxu0 0.0
    %2447 = vmatpush1.msra.mxu0 0.0
    %2448 = vmatprep.subr.mxu0 0.0
    %2449 = vmatpush1.msra.mxu0 0.0
    %2450 = vmatprep.subr.mxu0 0.0
    %2451 = vmatpush1.msra.mxu0 0.0
    %2452 = vmatprep.subr.mxu0 0.0
    %2453 = vmatpush1.msra.mxu0 0.0
    %2454 = vmatprep.subr.mxu0 0.0
    %2455 = vmatpush1.msra.mxu0 0.0
    %2456 = vmatprep.subr.mxu0 0.0
    %2457 = vmatpush1.msra.mxu0 0.0
    %2458 = vmatprep.subr.mxu0 0.0
    %2459 = vmatpush1.msra.mxu0 0.0
    %v2460 = vand.u32 %v1990, 4294901760
    %2461 = vmatprep.subr.mxu0 %v2460
    %v2462 = vand.u32 %v1989, 4294901760
    %2463 = vmatpush1.msra.mxu0 %v2462
    %2464 = vmatprep.subr.mxu0 0.0
    %2465 = vmatpush2.msra.mxu0 0.0
    %2466 = vmatprep.subr.mxu0 0.0
    %2467 = vmatpush2.msra.mxu0 0.0
    %2468 = vmatprep.subr.mxu0 0.0
    %2469 = vmatpush2.msra.mxu0 0.0
    %2470 = vmatprep.subr.mxu0 0.0
    %2471 = vmatpush2.msra.mxu0 0.0
    %2472 = vmatprep.subr.mxu0 0.0
    %2473 = vmatpush2.msra.mxu0 0.0
    %2474 = vmatprep.subr.mxu0 0.0
    %2475 = vmatpush2.msra.mxu0 0.0
    %2476 = vmatprep.subr.mxu0 0.0
    %2477 = vmatpush2.msra.mxu0 0.0
    %2478 = vmatprep.subr.mxu0 0.0
    %2479 = vmatpush2.msra.mxu0 0.0
    %2480 = vmatprep.subr.mxu0 0.0
    %2481 = vmatpush2.msra.mxu0 0.0
    %2482 = vmatprep.subr.mxu0 0.0
    %2483 = vmatpush2.msra.mxu0 0.0
    %2484 = vmatprep.subr.mxu0 0.0
    %2485 = vmatpush2.msra.mxu0 0.0
    %2486 = vmatprep.subr.mxu0 0.0
    %2487 = vmatpush2.msra.mxu0 0.0
    %2488 = vmatprep.subr.mxu0 0.0
    %2489 = vmatpush2.msra.mxu0 0.0
    %2490 = vmatprep.subr.mxu0 0.0
    %2491 = vmatpush2.msra.mxu0 0.0
    %2492 = vmatprep.subr.mxu0 0.0
    %2493 = vmatpush2.msra.mxu0 0.0
    %2494 = vmatprep.subr.mxu0 0.0
    %2495 = vmatpush2.msra.mxu0 0.0
    %2496 = vmatprep.mubr.f32.mxu0 0.0
    %v2497 = vand.u32 %v1992, 4294901760
    %2498 = vmatmul.mubr.f32.gmra.mxu0 %v2497
    %v2499 = vpop.f32.mrf.mxu0
    %v2500 = vadd.f32 %v2419, %v2499
    %v2501 = vpop.f32.mrf.mxu0
    %v2502 = vadd.f32 %v2421, %v2501
    %2503 = vmatprep.mubr.f32.mxu0 0.0
    %v2504 = vand.u32 %v1995, 4294901760
    %2505 = vmatmul.mubr.f32.gmra.mxu0 %v2504
    %v2506 = vpop.f32.mrf.mxu0
    %v2507 = vadd.f32 %v2426, %v2506
    %v2508 = vpop.f32.mrf.mxu0
    %v2509 = vadd.f32 %v2428, %v2508
    %2510 = vdwg.mxu0
    %v2511 = vmul.f32 %v21, %v2500
    %v2512 = vmul.f32 %v22, %v2502
    %v2513 = vmul.f32 %v23, %v2507
    %v2514 = vmul.f32 %v24, %v2509
    %2515 = vst [vmem:[#allocation2] sm:$0xff] %v2511
    %2516 = vst [vmem:[#allocation2 + $0x8] sm:$0xff] %v2512
    %2517 = vst [vmem:[#allocation2 + $0x10] sm:$0xff] %v2513
    %2518 = vst [vmem:[#allocation2 + $0x18] sm:$0xff] %v2514
    // Predicated region
    $region22: #{tpu_custom_call.1} parent=1 // pred_check
      _
    $region23: #{tpu_custom_call.1} parent=1 // pred_check_branch
      %2520 = sbr.rel (0) target = $region25
    $region24: #{tpu_custom_call.1} parent=1 // pred_region
      %s2522 = ssub.s32 512, 512
      %2523 = vsyncadd [#allocation3], %s2522
      %s2524 = sshll.u32 [#allocation2], 4
      %s2525 = int_to_ptr.vmem [resolvable:$true] %s2524
      %2530 = dma.vmem_to_hbm [thread:$0]  %s2525, 512, %s5, [#allocation3], 256, 256, 16
    $region25: #{tpu_custom_call.1} parent=1 // pred_fallthru
      _
    // Predicated region
    $region26: #{tpu_custom_call.1} parent=1 // pred_check
      _
    $region27: #{tpu_custom_call.1} parent=1 // pred_check_branch
      %2532 = sbr.rel (0) target = $region29
    $region28: #{tpu_custom_call.1} parent=1 // pred_region
      %2533 = dma.done [#allocation3], 512
    $region29: #{tpu_custom_call.1} parent=1 // pred_fallthru
      _
    %2534 = vsyncpa [#allocation3], 1

</llo_original>
